<compile_context>
chip_gen: v5e
topology: v5e:2x2
jax: 0.10.0
libtpu: 0.0.40
codegen_flags: <defaults>
</compile_context>

<pallas_src>
import functools
import math

import jax
import jax.numpy as jnp
from jax.experimental import pallas as pl
from jax.experimental.pallas import tpu as pltpu

EPS = 1e-5
_HIGHEST = jax.lax.Precision.HIGHEST   # reference only


# --------------------------------------------------------------------------- #
# Fused Tree kernel: 4 x (3x3 conv + BN [+ residual] + ReLU) + root 1x1+BN+ReLU.
# Activations live in a lane-dense (N*H, W*Cp) layout (W*Cp multiple of 128).
# --------------------------------------------------------------------------- #
def _tree_kernel(x_ref, m_ref, r_ref, b_ref, o_ref, pad_ref, *, H, d):
    NH, WC = x_ref.shape
    halo = (pad_ref.shape[0] - NH) // 2          # static python int

    x = x_ref[...]                               # (NH, WC) f32, images stacked on H
    b = b_ref[...]                               # (8, WC)  folded BN biases (rows 0..4)

    # Validity masks for the h+/-d taps: a source row is invalid if it falls
    # outside its own image (images are stacked along the sublane axis).
    rows = jax.lax.broadcasted_iota(jnp.int32, (NH, WC), 0)
    valid_dn = rows >= d                          # global top boundary
    valid_up = rows < NH - d                      # global bottom boundary
    for img in range(1, NH // H):                 # static loop over inner boundaries
        bnd = img * H
        valid_dn &= ~((rows >= bnd) & (rows < bnd + d))
        valid_up &= ~((rows >= bnd - d) & (rows < bnd))

    # Zero the halo rows once; per-conv stores only touch the middle NH rows.
    pad_ref[...] = jnp.zeros_like(pad_ref)

    def conv3x3_bn_relu(a, idx, residual=None):
        # Height taps = shifted sublane reads from the halo-padded VMEM scratch
        # (no MXU work), with image-boundary masking.
        pad_ref[pl.ds(halo, NH), :] = a
        a_dn = jnp.where(valid_dn, pad_ref[pl.ds(halo - d, NH), :], 0.0)   # a[h-d]
        a_up = jnp.where(valid_up, pad_ref[pl.ds(halo + d, NH), :], 0.0)   # a[h+d]
        # One fused K=3*WC matmul: width taps + channel mixing + folded BN scale
        # live in the banded (3*WC, WC) matrix m_ref[idx].  bf16 operands,
        # f32 accumulation (== DEFAULT MXU precision on f32 inputs).
        a3 = jnp.concatenate([a_dn, a, a_up], axis=1).astype(jnp.bfloat16)
        y = jnp.dot(a3, m_ref[idx], preferred_element_type=jnp.float32)
        y = y + b[idx:idx + 1, :]                 # folded BN bias
        if residual is not None:
            y = y + residual
        return jnp.maximum(y, 0.0)

    # tree1 = BasicBlock(x, residual=x)
    h1 = conv3x3_bn_relu(x, 0)
    x1 = conv3x3_bn_relu(h1, 1, residual=x)
    # tree2 = BasicBlock(x1, residual=x1)
    h2 = conv3x3_bn_relu(x1, 2)
    x2 = conv3x3_bn_relu(h2, 3, residual=x1)
    # root: ReLU(BN(Conv1x1(cat([x2, x1], C)))) as one fused K=2*WC matmul
    # (root_residual=False -> no extra add).
    xr = jnp.concatenate([x2, x1], axis=1).astype(jnp.bfloat16)
    y = jnp.dot(xr, r_ref[...], preferred_element_type=jnp.float32)
    o_ref[...] = jnp.maximum(y + b[4:5, :], 0.0).astype(o_ref.dtype)


# --------------------------------------------------------------------------- #
# One-time, wrapper-side weight packing (hoisted out of the per-call jit path).
# --------------------------------------------------------------------------- #
def _pad_channels(C, W, lane=128):
    step = lane // math.gcd(W, lane)
    return max(step, ((C + step - 1) // step) * step)


def _conv_band_matrix(w_hwio, scale, W, Cp, d):
    """(3,3,C,C) conv weight + BN scale -> fused (3*W*Cp, W*Cp) banded matrix.
    Row blocks ordered [h-d taps, center, h+d taps] to match concat([a_dn,a,a_up]);
    channels zero-padded to Cp."""
    C = w_hwio.shape[2]
    ws = jnp.zeros((3, 3, Cp, Cp), jnp.float32)
    ws = ws.at[:, :, :C, :C].set(w_hwio * scale[None, None, None, :])
    s_idx = jnp.arange(W)[:, None]      # source width index
    w_idx = jnp.arange(W)[None, :]      # destination width index
    mats = []
    for kh in range(3):
        m = jnp.zeros((W, Cp, W, Cp), jnp.float32)
        for kw in range(3):
            mask = (s_idx - w_idx == d * (kw - 1)).astype(jnp.float32)     # (W, W)
            m = m + mask[:, None, :, None] * ws[kh, kw][None, :, None, :]
        mats.append(m.reshape(W * Cp, W * Cp))
    return jnp.concatenate(mats, axis=0)                                    # (3WC, WC)


def _root_matrix(w2_cc, w1_cc, scale, W, Cp):
    """1x1 root conv (+BN scale) -> fused block-diagonal (2*W*Cp, W*Cp).
    Rows [0:WC] act on x2, rows [WC:2WC] on x1 (== cat([x2, x1], C) order)."""
    C = w2_cc.shape[0]
    eye = jnp.eye(W, dtype=jnp.float32)

    def blockdiag(w_cc):
        ws = jnp.zeros((Cp, Cp), jnp.float32).at[:C, :C].set(w_cc * scale[None, :])
        return (eye[:, None, :, None] * ws[None, :, None, :]).reshape(W * Cp, W * Cp)

    return jnp.concatenate([blockdiag(w2_cc), blockdiag(w1_cc)], axis=0)    # (2WC, WC)


def _tile_bias(bvec, W, Cp):
    bp = jnp.zeros((Cp,), jnp.float32).at[:bvec.shape[0]].set(bvec)
    return jnp.tile(bp, W)                                                  # (W*Cp,)


def pack_tree_params(params, W, dilation=1, c_pad=None):
    """One-time packing of Tree params into kernel-ready arrays."""
    p1, p2, pr = params["tree1"], params["tree2"], params["root"]
    C = p1["w1"].shape[2]
    Cp = _pad_channels(C, W) if c_pad is None else c_pad
    d = dilation
    WC = W * Cp

    m_all = jnp.stack([
        _conv_band_matrix(p1["w1"], p1["s1"], W, Cp, d),
        _conv_band_matrix(p1["w2"], p1["s2"], W, Cp, d),
        _conv_band_matrix(p2["w1"], p2["s1"], W, Cp, d),
        _conv_band_matrix(p2["w2"], p2["s2"], W, Cp, d),
    ]).astype(jnp.bfloat16)                                           # (4, 3WC, WC)
    r_all = _root_matrix(pr["w2"], pr["w1"], pr["s"], W, Cp).astype(jnp.bfloat16)

    b_all = jnp.zeros((8, WC), jnp.float32)                           # one (8,128) tile
    for i, bias in enumerate([p1["b1"], p1["b2"], p2["b1"], p2["b2"], pr["b"]]):
        b_all = b_all.at[i].set(_tile_bias(bias, W, Cp))
    return m_all, r_all, b_all


# --------------------------------------------------------------------------- #
# Forward wrapper (single pallas_call, single grid step).
# --------------------------------------------------------------------------- #
@functools.partial(jax.jit, static_argnames=("dilation",))
def tree_forward(x_nchw, m_all, r_all, b_all, dilation=1):
    N, C, H, W = x_nchw.shape
    WC = m_all.shape[-1]
    Cp = WC // W
    NH = N * H
    halo = max(8, ((dilation + 7) // 8) * 8)

    # NCHW -> lane-dense (N*H, W*Cp); channels zero-padded so W*Cp % 128 == 0.
    x = jnp.transpose(x_nchw, (0, 2, 3, 1)).astype(jnp.float32)
    x = jnp.pad(x, ((0, 0), (0, 0), (0, 0), (0, Cp - C)))
    x2d = x.reshape(NH, WC)

    kernel = functools.partial(_tree_kernel, H=H, d=dilation)
    out = pl.pallas_call(
        kernel,
        out_shape=jax.ShapeDtypeStruct((NH, WC), jnp.float32),
        grid=(1,),
        in_specs=[
            pl.BlockSpec((NH, WC), lambda i: (0, 0)),               # activations
            pl.BlockSpec((4, 3 * WC, WC), lambda i: (0, 0, 0)),     # fused conv mats
            pl.BlockSpec((2 * WC, WC), lambda i: (0, 0)),           # fused root mat
            pl.BlockSpec((8, WC), lambda i: (0, 0)),                # folded biases
        ],
        out_specs=pl.BlockSpec((NH, WC), lambda i: (0, 0)),
        scratch_shapes=[pltpu.VMEM((NH + 2 * halo, WC), jnp.float32)],  # halo buffer
        compiler_params=pltpu.CompilerParams(dimension_semantics=("arbitrary",)),
    )(x2d, m_all, r_all, b_all)

    out = out.reshape(N, H, W, Cp)[..., :C]                          # drop channel pad
    return jnp.transpose(out, (0, 3, 1, 2))                          # back to NCHW


# --------------------------------------------------------------------------- #
# Deterministic parameter init + BN folding
# --------------------------------------------------------------------------- #
def fold_bn(gamma, beta, mean, var):
    scale = gamma / jnp.sqrt(var + EPS)
    bias = beta - mean * scale
    return scale, bias


def init_params(key, C):
    ks = jax.random.split(key, 10)

    def conv3x3_w(k, cin, cout):
        std = 1.0 / math.sqrt(cin * 9)
        return std * jax.random.normal(k, (3, 3, cin, cout), jnp.float32)

    def bn(k, c):
        k1, k2, k3 = jax.random.split(k, 3)
        gamma = 1.0 + 0.1 * jax.random.normal(k1, (c,), jnp.float32)
        beta = 0.1 * jax.random.normal(k2, (c,), jnp.float32)
        mean = 0.1 * jax.random.normal(k3, (c,), jnp.float32)
        var = jnp.ones((c,), jnp.float32)
        return fold_bn(gamma, beta, mean, var)

    def block_params(k):
        k1, k2, k3, k4 = jax.random.split(k, 4)
        s1, b1 = bn(k3, C)
        s2, b2 = bn(k4, C)
        return {"w1": conv3x3_w(k1, C, C), "w2": conv3x3_w(k2, C, C),
                "s1": s1, "b1": b1, "s2": s2, "b2": b2}

    # Root: Conv2d(2C, C, 1) -> (2C, C) matrix; rows [:C] act on x2, [C:] on x1.
    root_w = (1.0 / math.sqrt(2 * C)) * jax.random.normal(ks[2], (2 * C, C), jnp.float32)
    rs, rb = bn(ks[3], C)
    return {
        "tree1": block_params(ks[0]),
        "tree2": block_params(ks[1]),
        "root": {"w2": root_w[:C], "w1": root_w[C:], "s": rs, "b": rb},
    }


# --------------------------------------------------------------------------- #
# Pure-JAX reference (HIGHEST precision ground truth)
# --------------------------------------------------------------------------- #
def _ref_conv(x, w, s, b, res, d=1):
    y = jax.lax.conv_general_dilated(
        x, w, window_strides=(1, 1), padding=[(d, d), (d, d)],
        rhs_dilation=(d, d), dimension_numbers=("NHWC", "HWIO", "NHWC"),
        precision=_HIGHEST)
    return jnp.maximum(y * s + b + res, 0.0)


def _ref_block(x, p, res, d=1):
    out = _ref_conv(x, p["w1"], p["s1"], p["b1"], jnp.zeros_like(x), d)
    return _ref_conv(out, p["w2"], p["s2"], p["b2"], res, d)


def ref_tree_forward(x_nchw, params, d=1):
    x = jnp.transpose(x_nchw, (0, 2, 3, 1)).astype(jnp.float32)
    x1 = _ref_block(x, params["tree1"], x, d)
    x2 = _ref_block(x1, params["tree2"], x1, d)
    r = params["root"]
    y = jnp.einsum("nhwc,cd->nhwd", x2, r["w2"], precision=_HIGHEST) \
        + jnp.einsum("nhwc,cd->nhwd", x1, r["w1"], precision=_HIGHEST)
    y = jnp.maximum(y * r["s"] + r["b"], 0.0)
    return jnp.transpose(y, (0, 3, 1, 2))


# --------------------------------------------------------------------------- #
if __name__ == "__main__":
    key = jax.random.PRNGKey(0)
    kx, kp = jax.random.split(key)

    N, C, H, W = 2, 4, 16, 16
    x = jax.random.normal(kx, (N, C, H, W), jnp.float32)      # NCHW, like PyTorch
    params = init_params(kp, C)

    # One-time packing (hoisted out of the jitted forward path).
    packed = pack_tree_params(params, W=W, dilation=1)

    out = jax.block_until_ready(tree_forward(x, *packed, dilation=1))
    ref = jax.block_until_ready(ref_tree_forward(x, params, d=1))

    assert out.shape == (N, C, H, W) and out.dtype == jnp.float32
    # Kernel uses bf16 MXU operands (== default MXU precision on f32 inputs);
    # reference is HIGHEST, so tolerance sits above bf16 accumulation error.
    assert jnp.allclose(out, ref, rtol=3e-2, atol=3e-2), "mismatch vs pure-JAX reference"

    print("KERNEL_OK")
</pallas_src>

<mosaic_0001>
module attributes {stable_mosaic.version = 11 : i64} {
  func.func @_tree_kernel(%arg0: i32, %arg1: memref<32x128xf32, #tpu.memory_space<vmem>>, %arg2: memref<4x384x128xbf16, #tpu.memory_space<vmem>>, %arg3: memref<256x128xbf16, #tpu.memory_space<vmem>>, %arg4: memref<8x128xf32, #tpu.memory_space<vmem>>, %arg5: memref<32x128xf32, #tpu.memory_space<vmem>>, %arg6: memref<48x128xf32, #tpu.memory_space<vmem>>) attributes {dimension_semantics = [#tpu.dimension_semantics<arbitrary>], iteration_bounds = array<i64: 1>, scalar_prefetch = 0 : i64, scratch_operands = 1 : i64, tpu.core_type = #tpu.core_type<tc>, window_params = [{pipeline_mode = #tpu.pipeline_mode<synchronous>, transform_indices = @transform_0, window_bounds = array<i64: 32, 128>}, {pipeline_mode = #tpu.pipeline_mode<synchronous>, transform_indices = @transform_1, window_bounds = array<i64: 4, 384, 128>}, {pipeline_mode = #tpu.pipeline_mode<synchronous>, transform_indices = @transform_2, window_bounds = array<i64: 256, 128>}, {pipeline_mode = #tpu.pipeline_mode<synchronous>, transform_indices = @transform_3, window_bounds = array<i64: 8, 128>}, {pipeline_mode = #tpu.pipeline_mode<synchronous>, transform_indices = @transform_4, window_bounds = array<i64: 32, 128>}]} {
    %c0 = arith.constant 0 : index
    %c0_0 = arith.constant 0 : index
    %0 = vector.load %arg1[%c0, %c0_0] : memref<32x128xf32, #tpu.memory_space<vmem>>, vector<32x128xf32>
    %c0_1 = arith.constant 0 : index
    %c0_2 = arith.constant 0 : index
    %1 = vector.load %arg4[%c0_1, %c0_2] : memref<8x128xf32, #tpu.memory_space<vmem>>, vector<8x128xf32>
    %2 = tpu.iota {dimensions = array<i32: 0>} : vector<32x128xi32>
    %c1_i32 = arith.constant 1 : i32
    %3 = vector.broadcast %c1_i32 : i32 to vector<32x128xi32>
    %4 = arith.cmpi sge, %2, %3 : vector<32x128xi32>
    %c31_i32 = arith.constant 31 : i32
    %5 = vector.broadcast %c31_i32 : i32 to vector<32x128xi32>
    %6 = arith.cmpi slt, %2, %5 : vector<32x128xi32>
    %c16_i32 = arith.constant 16 : i32
    %7 = vector.broadcast %c16_i32 : i32 to vector<32x128xi32>
    %8 = arith.cmpi sge, %2, %7 : vector<32x128xi32>
    %c17_i32 = arith.constant 17 : i32
    %9 = vector.broadcast %c17_i32 : i32 to vector<32x128xi32>
    %10 = arith.cmpi slt, %2, %9 : vector<32x128xi32>
    %11 = arith.andi %8, %10 : vector<32x128xi1>
    %cst = arith.constant dense<true> : vector<32x128xi1>
    %12 = arith.xori %11, %cst : vector<32x128xi1>
    %13 = arith.andi %4, %12 : vector<32x128xi1>
    %c15_i32 = arith.constant 15 : i32
    %14 = vector.broadcast %c15_i32 : i32 to vector<32x128xi32>
    %15 = arith.cmpi sge, %2, %14 : vector<32x128xi32>
    %c16_i32_3 = arith.constant 16 : i32
    %16 = vector.broadcast %c16_i32_3 : i32 to vector<32x128xi32>
    %17 = arith.cmpi slt, %2, %16 : vector<32x128xi32>
    %18 = arith.andi %15, %17 : vector<32x128xi1>
    %cst_4 = arith.constant dense<true> : vector<32x128xi1>
    %19 = arith.xori %18, %cst_4 : vector<32x128xi1>
    %20 = arith.andi %6, %19 : vector<32x128xi1>
    %cst_5 = arith.constant 0.000000e+00 : f32
    %21 = vector.broadcast %cst_5 : f32 to vector<48x128xf32>
    %c0_6 = arith.constant 0 : index
    %c0_7 = arith.constant 0 : index
    %22 = vector.load %arg6[%c0_6, %c0_7] : memref<48x128xf32, #tpu.memory_space<vmem>>, vector<48x128xf32>
    tpu.vector_store %arg6[%c0_6, %c0_7], %21 {strides = array<i32>} : memref<48x128xf32, #tpu.memory_space<vmem>>, vector<48x128xf32>,
    %c8 = arith.constant 8 : index
    %c0_8 = arith.constant 0 : index
    %23 = vector.load %arg6[%c8, %c0_8] : memref<48x128xf32, #tpu.memory_space<vmem>>, vector<32x128xf32>
    tpu.vector_store %arg6[%c8, %c0_8], %0 {strides = array<i32>} : memref<48x128xf32, #tpu.memory_space<vmem>>, vector<32x128xf32>,
    %c7 = arith.constant 7 : index
    %c0_9 = arith.constant 0 : index
    %24 = vector.load %arg6[%c7, %c0_9] : memref<48x128xf32, #tpu.memory_space<vmem>>, vector<32x128xf32>
    %cst_10 = arith.constant 0.000000e+00 : f32
    %25 = vector.broadcast %cst_10 : f32 to vector<32x128xf32>
    %26 = arith.select %13, %24, %25 : vector<32x128xi1>, vector<32x128xf32>
    %c9 = arith.constant 9 : index
    %c0_11 = arith.constant 0 : index
    %27 = vector.load %arg6[%c9, %c0_11] : memref<48x128xf32, #tpu.memory_space<vmem>>, vector<32x128xf32>
    %cst_12 = arith.constant 0.000000e+00 : f32
    %28 = vector.broadcast %cst_12 : f32 to vector<32x128xf32>
    %29 = arith.select %20, %27, %28 : vector<32x128xi1>, vector<32x128xf32>
    %30 = tpu.concatenate %26, %0, %29 in 1 : vector<32x128xf32>, vector<32x128xf32>, vector<32x128xf32> -> vector<32x384xf32>
    %31 = arith.truncf %30 : vector<32x384xf32> to vector<32x384xbf16>
    %c0_13 = arith.constant 0 : index
    %c0_14 = arith.constant 0 : index
    %c0_15 = arith.constant 0 : index
    %32 = vector.load %arg2[%c0_13, %c0_14, %c0_15] : memref<4x384x128xbf16, #tpu.memory_space<vmem>>, vector<1x384x128xbf16>
    %33 = vector.shape_cast %32 : vector<1x384x128xbf16> to vector<384x128xbf16>
    %cst_16 = arith.constant dense<0.000000e+00> : vector<32x128xf32>
    %34 = tpu.matmul %31, %33, %cst_16 {dimension_numbers = #tpu.dot_dimension_numbers<[1], [0], [0], [1], [0, 0, 1, 1], [], []>} : vector<32x384xbf16>, vector<384x128xbf16>, vector<32x128xf32> -> vector<32x128xf32>
    %35 = vector.extract_strided_slice %1 {offsets = [0, 0], sizes = [1, 128], strides = [1, 1]} : vector<8x128xf32> to vector<1x128xf32>
    %36 = vector.broadcast %35 : vector<1x128xf32> to vector<32x128xf32>
    %37 = arith.addf %34, %36 : vector<32x128xf32>
    %cst_17 = arith.constant 0.000000e+00 : f32
    %38 = vector.broadcast %cst_17 : f32 to vector<32x128xf32>
    %39 = arith.maximumf %37, %38 : vector<32x128xf32>
    %c8_18 = arith.constant 8 : index
    %c0_19 = arith.constant 0 : index
    %40 = vector.load %arg6[%c8_18, %c0_19] : memref<48x128xf32, #tpu.memory_space<vmem>>, vector<32x128xf32>
    tpu.vector_store %arg6[%c8_18, %c0_19], %39 {strides = array<i32>} : memref<48x128xf32, #tpu.memory_space<vmem>>, vector<32x128xf32>,
    %c7_20 = arith.constant 7 : index
    %c0_21 = arith.constant 0 : index
    %41 = vector.load %arg6[%c7_20, %c0_21] : memref<48x128xf32, #tpu.memory_space<vmem>>, vector<32x128xf32>
    %cst_22 = arith.constant 0.000000e+00 : f32
    %42 = vector.broadcast %cst_22 : f32 to vector<32x128xf32>
    %43 = arith.select %13, %41, %42 : vector<32x128xi1>, vector<32x128xf32>
    %c9_23 = arith.constant 9 : index
    %c0_24 = arith.constant 0 : index
    %44 = vector.load %arg6[%c9_23, %c0_24] : memref<48x128xf32, #tpu.memory_space<vmem>>, vector<32x128xf32>
    %cst_25 = arith.constant 0.000000e+00 : f32
    %45 = vector.broadcast %cst_25 : f32 to vector<32x128xf32>
    %46 = arith.select %20, %44, %45 : vector<32x128xi1>, vector<32x128xf32>
    %47 = tpu.concatenate %43, %39, %46 in 1 : vector<32x128xf32>, vector<32x128xf32>, vector<32x128xf32> -> vector<32x384xf32>
    %48 = arith.truncf %47 : vector<32x384xf32> to vector<32x384xbf16>
    %c1 = arith.constant 1 : index
    %c0_26 = arith.constant 0 : index
    %c0_27 = arith.constant 0 : index
    %49 = vector.load %arg2[%c1, %c0_26, %c0_27] : memref<4x384x128xbf16, #tpu.memory_space<vmem>>, vector<1x384x128xbf16>
    %50 = vector.shape_cast %49 : vector<1x384x128xbf16> to vector<384x128xbf16>
    %cst_28 = arith.constant dense<0.000000e+00> : vector<32x128xf32>
    %51 = tpu.matmul %48, %50, %cst_28 {dimension_numbers = #tpu.dot_dimension_numbers<[1], [0], [0], [1], [0, 0, 1, 1], [], []>} : vector<32x384xbf16>, vector<384x128xbf16>, vector<32x128xf32> -> vector<32x128xf32>
    %52 = vector.extract_strided_slice %1 {offsets = [1, 0], sizes = [1, 128], strides = [1, 1]} : vector<8x128xf32> to vector<1x128xf32>
    %53 = vector.broadcast %52 : vector<1x128xf32> to vector<32x128xf32>
    %54 = arith.addf %51, %53 : vector<32x128xf32>
    %55 = arith.addf %54, %0 : vector<32x128xf32>
    %cst_29 = arith.constant 0.000000e+00 : f32
    %56 = vector.broadcast %cst_29 : f32 to vector<32x128xf32>
    %57 = arith.maximumf %55, %56 : vector<32x128xf32>
    %c8_30 = arith.constant 8 : index
    %c0_31 = arith.constant 0 : index
    %58 = vector.load %arg6[%c8_30, %c0_31] : memref<48x128xf32, #tpu.memory_space<vmem>>, vector<32x128xf32>
    tpu.vector_store %arg6[%c8_30, %c0_31], %57 {strides = array<i32>} : memref<48x128xf32, #tpu.memory_space<vmem>>, vector<32x128xf32>,
    %c7_32 = arith.constant 7 : index
    %c0_33 = arith.constant 0 : index
    %59 = vector.load %arg6[%c7_32, %c0_33] : memref<48x128xf32, #tpu.memory_space<vmem>>, vector<32x128xf32>
    %cst_34 = arith.constant 0.000000e+00 : f32
    %60 = vector.broadcast %cst_34 : f32 to vector<32x128xf32>
    %61 = arith.select %13, %59, %60 : vector<32x128xi1>, vector<32x128xf32>
    %c9_35 = arith.constant 9 : index
    %c0_36 = arith.constant 0 : index
    %62 = vector.load %arg6[%c9_35, %c0_36] : memref<48x128xf32, #tpu.memory_space<vmem>>, vector<32x128xf32>
    %cst_37 = arith.constant 0.000000e+00 : f32
    %63 = vector.broadcast %cst_37 : f32 to vector<32x128xf32>
    %64 = arith.select %20, %62, %63 : vector<32x128xi1>, vector<32x128xf32>
    %65 = tpu.concatenate %61, %57, %64 in 1 : vector<32x128xf32>, vector<32x128xf32>, vector<32x128xf32> -> vector<32x384xf32>
    %66 = arith.truncf %65 : vector<32x384xf32> to vector<32x384xbf16>
    %c2 = arith.constant 2 : index
    %c0_38 = arith.constant 0 : index
    %c0_39 = arith.constant 0 : index
    %67 = vector.load %arg2[%c2, %c0_38, %c0_39] : memref<4x384x128xbf16, #tpu.memory_space<vmem>>, vector<1x384x128xbf16>
    %68 = vector.shape_cast %67 : vector<1x384x128xbf16> to vector<384x128xbf16>
    %cst_40 = arith.constant dense<0.000000e+00> : vector<32x128xf32>
    %69 = tpu.matmul %66, %68, %cst_40 {dimension_numbers = #tpu.dot_dimension_numbers<[1], [0], [0], [1], [0, 0, 1, 1], [], []>} : vector<32x384xbf16>, vector<384x128xbf16>, vector<32x128xf32> -> vector<32x128xf32>
    %70 = vector.extract_strided_slice %1 {offsets = [2, 0], sizes = [1, 128], strides = [1, 1]} : vector<8x128xf32> to vector<1x128xf32>
    %71 = vector.broadcast %70 : vector<1x128xf32> to vector<32x128xf32>
    %72 = arith.addf %69, %71 : vector<32x128xf32>
    %cst_41 = arith.constant 0.000000e+00 : f32
    %73 = vector.broadcast %cst_41 : f32 to vector<32x128xf32>
    %74 = arith.maximumf %72, %73 : vector<32x128xf32>
    %c8_42 = arith.constant 8 : index
    %c0_43 = arith.constant 0 : index
    %75 = vector.load %arg6[%c8_42, %c0_43] : memref<48x128xf32, #tpu.memory_space<vmem>>, vector<32x128xf32>
    tpu.vector_store %arg6[%c8_42, %c0_43], %74 {strides = array<i32>} : memref<48x128xf32, #tpu.memory_space<vmem>>, vector<32x128xf32>,
    %c7_44 = arith.constant 7 : index
    %c0_45 = arith.constant 0 : index
    %76 = vector.load %arg6[%c7_44, %c0_45] : memref<48x128xf32, #tpu.memory_space<vmem>>, vector<32x128xf32>
    %cst_46 = arith.constant 0.000000e+00 : f32
    %77 = vector.broadcast %cst_46 : f32 to vector<32x128xf32>
    %78 = arith.select %13, %76, %77 : vector<32x128xi1>, vector<32x128xf32>
    %c9_47 = arith.constant 9 : index
    %c0_48 = arith.constant 0 : index
    %79 = vector.load %arg6[%c9_47, %c0_48] : memref<48x128xf32, #tpu.memory_space<vmem>>, vector<32x128xf32>
    %cst_49 = arith.constant 0.000000e+00 : f32
    %80 = vector.broadcast %cst_49 : f32 to vector<32x128xf32>
    %81 = arith.select %20, %79, %80 : vector<32x128xi1>, vector<32x128xf32>
    %82 = tpu.concatenate %78, %74, %81 in 1 : vector<32x128xf32>, vector<32x128xf32>, vector<32x128xf32> -> vector<32x384xf32>
    %83 = arith.truncf %82 : vector<32x384xf32> to vector<32x384xbf16>
    %c3 = arith.constant 3 : index
    %c0_50 = arith.constant 0 : index
    %c0_51 = arith.constant 0 : index
    %84 = vector.load %arg2[%c3, %c0_50, %c0_51] : memref<4x384x128xbf16, #tpu.memory_space<vmem>>, vector<1x384x128xbf16>
    %85 = vector.shape_cast %84 : vector<1x384x128xbf16> to vector<384x128xbf16>
    %cst_52 = arith.constant dense<0.000000e+00> : vector<32x128xf32>
    %86 = tpu.matmul %83, %85, %cst_52 {dimension_numbers = #tpu.dot_dimension_numbers<[1], [0], [0], [1], [0, 0, 1, 1], [], []>} : vector<32x384xbf16>, vector<384x128xbf16>, vector<32x128xf32> -> vector<32x128xf32>
    %87 = vector.extract_strided_slice %1 {offsets = [3, 0], sizes = [1, 128], strides = [1, 1]} : vector<8x128xf32> to vector<1x128xf32>
    %88 = vector.broadcast %87 : vector<1x128xf32> to vector<32x128xf32>
    %89 = arith.addf %86, %88 : vector<32x128xf32>
    %90 = arith.addf %89, %57 : vector<32x128xf32>
    %cst_53 = arith.constant 0.000000e+00 : f32
    %91 = vector.broadcast %cst_53 : f32 to vector<32x128xf32>
    %92 = arith.maximumf %90, %91 : vector<32x128xf32>
    %93 = tpu.concatenate %92, %57 in 1 : vector<32x128xf32>, vector<32x128xf32> -> vector<32x256xf32>
    %94 = arith.truncf %93 : vector<32x256xf32> to vector<32x256xbf16>
    %c0_54 = arith.constant 0 : index
    %c0_55 = arith.constant 0 : index
    %95 = vector.load %arg3[%c0_54, %c0_55] : memref<256x128xbf16, #tpu.memory_space<vmem>>, vector<256x128xbf16>
    %cst_56 = arith.constant dense<0.000000e+00> : vector<32x128xf32>
    %96 = tpu.matmul %94, %95, %cst_56 {dimension_numbers = #tpu.dot_dimension_numbers<[1], [0], [0], [1], [0, 0, 1, 1], [], []>} : vector<32x256xbf16>, vector<256x128xbf16>, vector<32x128xf32> -> vector<32x128xf32>
    %97 = vector.extract_strided_slice %1 {offsets = [4, 0], sizes = [1, 128], strides = [1, 1]} : vector<8x128xf32> to vector<1x128xf32>
    %98 = vector.broadcast %97 : vector<1x128xf32> to vector<32x128xf32>
    %99 = arith.addf %96, %98 : vector<32x128xf32>
    %cst_57 = arith.constant 0.000000e+00 : f32
    %100 = vector.broadcast %cst_57 : f32 to vector<32x128xf32>
    %101 = arith.maximumf %99, %100 : vector<32x128xf32>
    %c0_58 = arith.constant 0 : index
    %c0_59 = arith.constant 0 : index
    %102 = vector.load %arg5[%c0_58, %c0_59] : memref<32x128xf32, #tpu.memory_space<vmem>>, vector<32x128xf32>
    tpu.vector_store %arg5[%c0_58, %c0_59], %101 {strides = array<i32>} : memref<32x128xf32, #tpu.memory_space<vmem>>, vector<32x128xf32>,
    return
  }
  func.func @transform_0(%arg0: i32) -> (i32, i32) {
    %c0_i32 = arith.constant 0 : i32
    %c0_i32_0 = arith.constant 0 : i32
    %c0_i32_1 = arith.constant 0 : i32
    return %c0_i32, %c0_i32_0 : i32, i32
  }
  func.func @transform_1(%arg0: i32) -> (i32, i32, i32) {
    %c0_i32 = arith.constant 0 : i32
    %c0_i32_0 = arith.constant 0 : i32
    %c0_i32_1 = arith.constant 0 : i32
    %c0_i32_2 = arith.constant 0 : i32
    return %c0_i32, %c0_i32_0, %c0_i32_1 : i32, i32, i32
  }
  func.func @transform_2(%arg0: i32) -> (i32, i32) {
    %c0_i32 = arith.constant 0 : i32
    %c0_i32_0 = arith.constant 0 : i32
    %c0_i32_1 = arith.constant 0 : i32
    return %c0_i32, %c0_i32_0 : i32, i32
  }
  func.func @transform_3(%arg0: i32) -> (i32, i32) {
    %c0_i32 = arith.constant 0 : i32
    %c0_i32_0 = arith.constant 0 : i32
    %c0_i32_1 = arith.constant 0 : i32
    return %c0_i32, %c0_i32_0 : i32, i32
  }
  func.func @transform_4(%arg0: i32) -> (i32, i32) {
    %c0_i32 = arith.constant 0 : i32
    %c0_i32_0 = arith.constant 0 : i32
    %c0_i32_1 = arith.constant 0 : i32
    return %c0_i32, %c0_i32_0 : i32, i32
  }
}

</mosaic_0001>

<llo_original>
// kernel: tree_forward.1
$region0: #{tree_forward.1}
  #allocation0 [shape = 'u32[]', space=smem, size = 0x4, offset = 0x4, fixed_abs, tag = 'smem constant byte address 0x4 - core index']
  #allocation1 [shape = 'u32[72,128]{1,0:T(1,128)}', space=vmem, size = 0x9000, scoped, tag = 'internal scratch']
  #allocation2 [shape = 'f32[48,128]{1,0:T(8,128)}', space=vmem, size = 0x6000, scoped, tag = 'scratch operand']
  %s0 = inlined_call_operand.vmem [shape: f32[32,128], index: 0, kind: input, shape index: {}]
  %s1 = inlined_call_operand.vmem [shape: bf16[4,384,128], index: 1, kind: input, shape index: {}]
  %s2 = inlined_call_operand.vmem [shape: bf16[256,128], index: 2, kind: input, shape index: {}]
  %s3 = inlined_call_operand.vmem [shape: f32[8,128], index: 3, kind: input, shape index: {}]
  %s4 = inlined_call_operand.vmem [shape: f32[32,128], index: 4, kind: output, shape index: {}]
  %s5 = sld [smem:[#allocation0]]
  $region26: #{tree_forward.1} parent=0
    _
  %s7 = ssub.s32 1, %s5
  %s8 = scalar_select 0, %s7, %s5
  // Predicated region
  $region2: #{tree_forward.1} parent=0 // pred_check
    _
  $region3: #{tree_forward.1} parent=0 // pred_check_branch
    %10 = sbr.rel (0) target = $region5
  $region4: #{tree_forward.1} parent=0 // pred_region
    _
  $region5: #{tree_forward.1} parent=0 // pred_fallthru
    _
  // Predicated region
  $region6: #{tree_forward.1} parent=0 // pred_check
    _
  $region7: #{tree_forward.1} parent=0 // pred_check_branch
    %12 = sbr.rel (0) target = $region9
  $region8: #{tree_forward.1} parent=0 // pred_region
    _
  $region9: #{tree_forward.1} parent=0 // pred_fallthru
    _
  // Predicated region
  $region10: #{tree_forward.1} parent=0 // pred_check
    _
  $region11: #{tree_forward.1} parent=0 // pred_check_branch
    %14 = sbr.rel (0) target = $region13
  $region12: #{tree_forward.1} parent=0 // pred_region
    _
  $region13: #{tree_forward.1} parent=0 // pred_fallthru
    _
  // Predicated region
  $region14: #{tree_forward.1} parent=0 // pred_check
    _
  $region15: #{tree_forward.1} parent=0 // pred_check_branch
    %16 = sbr.rel (0) target = $region17
  $region16: #{tree_forward.1} parent=0 // pred_region
    _
  $region17: #{tree_forward.1} parent=0 // pred_fallthru
    _
  %v17 = vld [vmem:[%s0] sm:$0xff]
  %v18 = vld [vmem:[%s0 + $0x8] sm:$0xff]
  %v19 = vld [vmem:[%s0 + $0x10] sm:$0xff]
  %v20 = vld [vmem:[%s0 + $0x18] sm:$0xff]
  %v21 = vld [vmem:[%s3] sm:$0xff]
  %v22 = vlaneseq
  %v23 = vshrl.u32 %v22, 7
  %v24 = vadd.s32 %v23, 8
  %v25 = vadd.s32 %v23, 16
  %v26 = vadd.s32 %v23, 24
  %vm27 = vcmp.ge.s32.totalorder %v23, 1
  %vm28 = vcmp.ge.s32.totalorder %v24, 1
  %vm29 = vcmp.ge.s32.totalorder %v25, 1
  %vm30 = vcmp.ge.s32.totalorder %v26, 1
  %vm31 = vcmp.lt.s32.totalorder %v23, 31
  %vm32 = vcmp.lt.s32.totalorder %v24, 31
  %vm33 = vcmp.lt.s32.totalorder %v25, 31
  %vm34 = vcmp.lt.s32.totalorder %v26, 31
  %vm35 = vcmp.ge.s32.totalorder %v23, 16
  %vm36 = vcmp.ge.s32.totalorder %v24, 16
  %vm37 = vcmp.ge.s32.totalorder %v25, 16
  %vm38 = vcmp.ge.s32.totalorder %v26, 16
  %vm39 = vcmp.lt.s32.totalorder %v23, 17
  %vm40 = vcmp.lt.s32.totalorder %v24, 17
  %vm41 = vcmp.lt.s32.totalorder %v25, 17
  %vm42 = vcmp.lt.s32.totalorder %v26, 17
  %vm43 = vmand %vm35, %vm39
  %vm44 = vmand %vm36, %vm40
  %vm45 = vmand %vm37, %vm41
  %vm46 = vmand %vm38, %vm42
  %vm47 = vmxor %vm43, 1
  %vm48 = vmxor %vm44, 1
  %vm49 = vmxor %vm45, 1
  %vm50 = vmxor %vm46, 1
  %vm51 = vmand %vm27, %vm47
  %vm52 = vmand %vm28, %vm48
  %vm53 = vmand %vm29, %vm49
  %vm54 = vmand %vm30, %vm50
  %vm55 = vcmp.ge.s32.totalorder %v23, 15
  %vm56 = vcmp.ge.s32.totalorder %v24, 15
  %vm57 = vcmp.ge.s32.totalorder %v25, 15
  %vm58 = vcmp.ge.s32.totalorder %v26, 15
  %vm59 = vcmp.lt.s32.totalorder %v23, 16
  %vm60 = vcmp.lt.s32.totalorder %v24, 16
  %vm61 = vcmp.lt.s32.totalorder %v25, 16
  %vm62 = vcmp.lt.s32.totalorder %v26, 16
  %vm63 = vmand %vm55, %vm59
  %vm64 = vmand %vm56, %vm60
  %vm65 = vmand %vm57, %vm61
  %vm66 = vmand %vm58, %vm62
  %vm67 = vmxor %vm63, 1
  %vm68 = vmxor %vm64, 1
  %vm69 = vmxor %vm65, 1
  %vm70 = vmxor %vm66, 1
  %vm71 = vmand %vm31, %vm67
  %vm72 = vmand %vm32, %vm68
  %vm73 = vmand %vm33, %vm69
  %vm74 = vmand %vm34, %vm70
  %75 = vst [vmem:[#allocation2] sm:$0xff] 0.0
  %76 = vst [vmem:[#allocation2 + $0x8] sm:$0xff] 0.0
  %77 = vst [vmem:[#allocation2 + $0x10] sm:$0xff] 0.0
  %78 = vst [vmem:[#allocation2 + $0x18] sm:$0xff] 0.0
  %79 = vst [vmem:[#allocation2 + $0x20] sm:$0xff] 0.0
  %80 = vst [vmem:[#allocation2 + $0x28] sm:$0xff] 0.0
  %81 = vst [vmem:[#allocation2 + $0x8] sm:$0xff] %v17
  %82 = vst [vmem:[#allocation2 + $0x10] sm:$0xff] %v18
  %83 = vst [vmem:[#allocation2 + $0x18] sm:$0xff] %v19
  %84 = vst [vmem:[#allocation2 + $0x20] sm:$0xff] %v20
  %v85 = vld [vmem:[#allocation2 + $0x7] sm:$0xff]
  %v86 = vld [vmem:[#allocation2 + $0xf] sm:$0xff]
  %v87 = vld [vmem:[#allocation2 + $0x17] sm:$0xff]
  %v88 = vld [vmem:[#allocation2 + $0x1f] sm:$0xff]
  %v89 = vsel %vm51, %v85, 0.0
  %v90 = vsel %vm52, %v86, 0.0
  %v91 = vsel %vm53, %v87, 0.0
  %v92 = vsel %vm54, %v88, 0.0
  %v93 = vld [vmem:[#allocation2 + $0x9] sm:$0xff]
  %v94 = vld [vmem:[#allocation2 + $0x11] sm:$0xff]
  %v95 = vld [vmem:[#allocation2 + $0x19] sm:$0xff]
  %v96 = vld [vmem:[#allocation2 + $0x21] sm:$0xff]
  %v97 = vsel %vm71, %v93, 0.0
  %v98 = vsel %vm72, %v94, 0.0
  %v99 = vsel %vm73, %v95, 0.0
  %v100 = vsel %vm74, %v96, 0.0
  %v101 = vpack.c.bf16 %v90, %v89
  %v102 = vpack.c.bf16 %v18, %v17
  %v103 = vpack.c.bf16 %v98, %v97
  %v104 = vpack.c.bf16 %v92, %v91
  %v105 = vpack.c.bf16 %v20, %v19
  %v106 = vpack.c.bf16 %v100, %v99
  %v107 = vld [vmem:[%s1] sm:$0xf]
  %v108 = vld [vmem:[%s1 + $0x4] sm:$0xf]
  %v109 = vld [vmem:[%s1 + $0x8] sm:$0xf]
  %v110 = vld [vmem:[%s1 + $0xc] sm:$0xf]
  %v111 = vld [vmem:[%s1 + $0x10] sm:$0xf]
  %v112 = vld [vmem:[%s1 + $0x14] sm:$0xf]
  %v113 = vld [vmem:[%s1 + $0x18] sm:$0xf]
  %v114 = vld [vmem:[%s1 + $0x1c] sm:$0xf]
  %v115 = vld [vmem:[%s1 + $0x20] sm:$0xf]
  %v116 = vld [vmem:[%s1 + $0x24] sm:$0xf]
  %v117 = vld [vmem:[%s1 + $0x28] sm:$0xf]
  %v118 = vld [vmem:[%s1 + $0x2c] sm:$0xf]
  %v119 = vld [vmem:[%s1 + $0x30] sm:$0xf]
  %v120 = vld [vmem:[%s1 + $0x34] sm:$0xf]
  %v121 = vld [vmem:[%s1 + $0x38] sm:$0xf]
  %v122 = vld [vmem:[%s1 + $0x3c] sm:$0xf]
  %v123 = vld [vmem:[%s1 + $0x40] sm:$0xf]
  %v124 = vld [vmem:[%s1 + $0x44] sm:$0xf]
  %v125 = vld [vmem:[%s1 + $0x48] sm:$0xf]
  %v126 = vld [vmem:[%s1 + $0x4c] sm:$0xf]
  %v127 = vld [vmem:[%s1 + $0x50] sm:$0xf]
  %v128 = vld [vmem:[%s1 + $0x54] sm:$0xf]
  %v129 = vld [vmem:[%s1 + $0x58] sm:$0xf]
  %v130 = vld [vmem:[%s1 + $0x5c] sm:$0xf]
  %v131 = vld [vmem:[%s1 + $0x60] sm:$0xf]
  %v132 = vld [vmem:[%s1 + $0x64] sm:$0xf]
  %v133 = vld [vmem:[%s1 + $0x68] sm:$0xf]
  %v134 = vld [vmem:[%s1 + $0x6c] sm:$0xf]
  %v135 = vld [vmem:[%s1 + $0x70] sm:$0xf]
  %v136 = vld [vmem:[%s1 + $0x74] sm:$0xf]
  %v137 = vld [vmem:[%s1 + $0x78] sm:$0xf]
  %v138 = vld [vmem:[%s1 + $0x7c] sm:$0xf]
  %v139 = vld [vmem:[%s1 + $0x80] sm:$0xf]
  %v140 = vld [vmem:[%s1 + $0x84] sm:$0xf]
  %v141 = vld [vmem:[%s1 + $0x88] sm:$0xf]
  %v142 = vld [vmem:[%s1 + $0x8c] sm:$0xf]
  %v143 = vld [vmem:[%s1 + $0x90] sm:$0xf]
  %v144 = vld [vmem:[%s1 + $0x94] sm:$0xf]
  %v145 = vld [vmem:[%s1 + $0x98] sm:$0xf]
  %v146 = vld [vmem:[%s1 + $0x9c] sm:$0xf]
  %v147 = vld [vmem:[%s1 + $0xa0] sm:$0xf]
  %v148 = vld [vmem:[%s1 + $0xa4] sm:$0xf]
  %v149 = vld [vmem:[%s1 + $0xa8] sm:$0xf]
  %v150 = vld [vmem:[%s1 + $0xac] sm:$0xf]
  %v151 = vld [vmem:[%s1 + $0xb0] sm:$0xf]
  %v152 = vld [vmem:[%s1 + $0xb4] sm:$0xf]
  %v153 = vld [vmem:[%s1 + $0xb8] sm:$0xf]
  %v154 = vld [vmem:[%s1 + $0xbc] sm:$0xf]
  %v155 = vperm.slane %v21, 0
  %v204 = vunpack.c.l.b16 %v107
  %v205 = vunpack.c.l.b16 %v108
  %v206 = vunpack.c.l.b16 %v109
  %v207 = vunpack.c.l.b16 %v110
  %v208 = vunpack.c.l.b16 %v111
  %v209 = vunpack.c.l.b16 %v112
  %v210 = vunpack.c.l.b16 %v113
  %v211 = vunpack.c.l.b16 %v114
  %v212 = vunpack.c.l.b16 %v115
  %v213 = vunpack.c.l.b16 %v116
  %v214 = vunpack.c.l.b16 %v117
  %v215 = vunpack.c.l.b16 %v118
  %v216 = vunpack.c.l.b16 %v119
  %v217 = vunpack.c.l.b16 %v120
  %v218 = vunpack.c.l.b16 %v121
  %v219 = vunpack.c.l.b16 %v122
  %v220 = vunpack.c.l.b16 %v123
  %v221 = vunpack.c.l.b16 %v124
  %v222 = vunpack.c.l.b16 %v125
  %v223 = vunpack.c.l.b16 %v126
  %v224 = vunpack.c.l.b16 %v127
  %v225 = vunpack.c.l.b16 %v128
  %v226 = vunpack.c.l.b16 %v129
  %v227 = vunpack.c.l.b16 %v130
  %v228 = vunpack.c.l.b16 %v131
  %v229 = vunpack.c.l.b16 %v132
  %v230 = vunpack.c.l.b16 %v133
  %v231 = vunpack.c.l.b16 %v134
  %v232 = vunpack.c.l.b16 %v135
  %v233 = vunpack.c.l.b16 %v136
  %v234 = vunpack.c.l.b16 %v137
  %v235 = vunpack.c.l.b16 %v138
  %v236 = vunpack.c.l.b16 %v139
  %v237 = vunpack.c.l.b16 %v140
  %v238 = vunpack.c.l.b16 %v141
  %v239 = vunpack.c.l.b16 %v142
  %v240 = vunpack.c.l.b16 %v143
  %v241 = vunpack.c.l.b16 %v144
  %v242 = vunpack.c.l.b16 %v145
  %v243 = vunpack.c.l.b16 %v146
  %v244 = vunpack.c.l.b16 %v147
  %v245 = vunpack.c.l.b16 %v148
  %v246 = vunpack.c.l.b16 %v149
  %v247 = vunpack.c.l.b16 %v150
  %v248 = vunpack.c.l.b16 %v151
  %v249 = vunpack.c.l.b16 %v152
  %v250 = vunpack.c.l.b16 %v153
  %v251 = vunpack.c.l.b16 %v154
  %v252 = vpack.c.b16 %v205, %v204
  %v253 = vpack.c.b16 %v207, %v206
  %v254 = vpack.c.b16 %v209, %v208
  %v255 = vpack.c.b16 %v211, %v210
  %v256 = vpack.c.b16 %v213, %v212
  %v257 = vpack.c.b16 %v215, %v214
  %v258 = vpack.c.b16 %v217, %v216
  %v259 = vpack.c.b16 %v219, %v218
  %v260 = vpack.c.b16 %v221, %v220
  %v261 = vpack.c.b16 %v223, %v222
  %v262 = vpack.c.b16 %v225, %v224
  %v263 = vpack.c.b16 %v227, %v226
  %v264 = vpack.c.b16 %v229, %v228
  %v265 = vpack.c.b16 %v231, %v230
  %v266 = vpack.c.b16 %v233, %v232
  %v267 = vpack.c.b16 %v235, %v234
  %v268 = vpack.c.b16 %v237, %v236
  %v269 = vpack.c.b16 %v239, %v238
  %v270 = vpack.c.b16 %v241, %v240
  %v271 = vpack.c.b16 %v243, %v242
  %v272 = vpack.c.b16 %v245, %v244
  %v273 = vpack.c.b16 %v247, %v246
  %v274 = vpack.c.b16 %v249, %v248
  %v275 = vpack.c.b16 %v251, %v250
  %300 = vmatpush.bf16.msra.mxu0 %v259
  %301 = vmatpush.bf16.msra.mxu0 %v258
  %302 = vmatpush.bf16.msra.mxu0 %v257
  %303 = vmatpush.bf16.msra.mxu0 %v256
  %304 = vmatpush.bf16.msra.mxu0 %v255
  %305 = vmatpush.bf16.msra.mxu0 %v254
  %306 = vmatpush.bf16.msra.mxu0 %v253
  %307 = vmatpush.bf16.msra.mxu0 %v252
  %308 = vmatmul.bf16.gmra.mxu0 %v101
  %v309 = vpop.f32.mrf.mxu0
  %v310 = vadd.f32 %v155, %v309
  %v311 = vpop.f32.mrf.mxu0
  %v312 = vadd.f32 %v155, %v311
  %313 = vmatmul.bf16.gmra.mxu0 %v104
  %v314 = vpop.f32.mrf.mxu0
  %v315 = vadd.f32 %v155, %v314
  %v316 = vpop.f32.mrf.mxu0
  %v317 = vadd.f32 %v155, %v316
  %318 = vdwg.mxu0
  %319 = vmatpush.bf16.msra.mxu0 %v267
  %320 = vmatpush.bf16.msra.mxu0 %v266
  %321 = vmatpush.bf16.msra.mxu0 %v265
  %322 = vmatpush.bf16.msra.mxu0 %v264
  %323 = vmatpush.bf16.msra.mxu0 %v263
  %324 = vmatpush.bf16.msra.mxu0 %v262
  %325 = vmatpush.bf16.msra.mxu0 %v261
  %326 = vmatpush.bf16.msra.mxu0 %v260
  %327 = vmatmul.bf16.gmra.mxu0 %v102
  %v328 = vpop.f32.mrf.mxu0
  %v329 = vadd.f32 %v310, %v328
  %v330 = vpop.f32.mrf.mxu0
  %v331 = vadd.f32 %v312, %v330
  %332 = vmatmul.bf16.gmra.mxu0 %v105
  %v333 = vpop.f32.mrf.mxu0
  %v334 = vadd.f32 %v315, %v333
  %v335 = vpop.f32.mrf.mxu0
  %v336 = vadd.f32 %v317, %v335
  %337 = vdwg.mxu0
  %338 = vmatpush.bf16.msra.mxu0 %v275
  %339 = vmatpush.bf16.msra.mxu0 %v274
  %340 = vmatpush.bf16.msra.mxu0 %v273
  %341 = vmatpush.bf16.msra.mxu0 %v272
  %342 = vmatpush.bf16.msra.mxu0 %v271
  %343 = vmatpush.bf16.msra.mxu0 %v270
  %344 = vmatpush.bf16.msra.mxu0 %v269
  %345 = vmatpush.bf16.msra.mxu0 %v268
  %346 = vmatmul.bf16.gmra.mxu0 %v103
  %v347 = vpop.f32.mrf.mxu0
  %v348 = vadd.f32 %v329, %v347
  %v349 = vpop.f32.mrf.mxu0
  %v350 = vadd.f32 %v331, %v349
  %351 = vmatmul.bf16.gmra.mxu0 %v106
  %v352 = vpop.f32.mrf.mxu0
  %v353 = vadd.f32 %v334, %v352
  %v354 = vpop.f32.mrf.mxu0
  %v355 = vadd.f32 %v336, %v354
  %356 = vdwg.mxu0
  %v357 = vmax.f32 %v348, 0.0
  %v358 = vmax.f32 %v350, 0.0
  %v359 = vmax.f32 %v353, 0.0
  %v360 = vmax.f32 %v355, 0.0
  %361 = vst [vmem:[#allocation2 + $0x8] sm:$0xff] %v357
  %362 = vst [vmem:[#allocation2 + $0x10] sm:$0xff] %v358
  %363 = vst [vmem:[#allocation2 + $0x18] sm:$0xff] %v359
  %364 = vst [vmem:[#allocation2 + $0x20] sm:$0xff] %v360
  %v365 = vld [vmem:[#allocation2 + $0x7] sm:$0xff]
  %v366 = vld [vmem:[#allocation2 + $0xf] sm:$0xff]
  %v367 = vld [vmem:[#allocation2 + $0x17] sm:$0xff]
  %v368 = vld [vmem:[#allocation2 + $0x1f] sm:$0xff]
  %v369 = vsel %vm51, %v365, 0.0
  %v370 = vsel %vm52, %v366, 0.0
  %v371 = vsel %vm53, %v367, 0.0
  %v372 = vsel %vm54, %v368, 0.0
  %v373 = vld [vmem:[#allocation2 + $0x9] sm:$0xff]
  %v374 = vld [vmem:[#allocation2 + $0x11] sm:$0xff]
  %v375 = vld [vmem:[#allocation2 + $0x19] sm:$0xff]
  %v376 = vld [vmem:[#allocation2 + $0x21] sm:$0xff]
  %v377 = vsel %vm71, %v373, 0.0
  %v378 = vsel %vm72, %v374, 0.0
  %v379 = vsel %vm73, %v375, 0.0
  %v380 = vsel %vm74, %v376, 0.0
  %v381 = vpack.c.bf16 %v370, %v369
  %v382 = vpack.c.bf16 %v358, %v357
  %v383 = vpack.c.bf16 %v378, %v377
  %v384 = vpack.c.bf16 %v372, %v371
  %v385 = vpack.c.bf16 %v360, %v359
  %v386 = vpack.c.bf16 %v380, %v379
  %s387 = scalar_lea.vmem %s1, 192
  %v388 = vld [vmem:[%s387] sm:$0xf]
  %v389 = vld [vmem:[%s387 + $0x4] sm:$0xf]
  %v390 = vld [vmem:[%s387 + $0x8] sm:$0xf]
  %v391 = vld [vmem:[%s387 + $0xc] sm:$0xf]
  %v392 = vld [vmem:[%s387 + $0x10] sm:$0xf]
  %v393 = vld [vmem:[%s387 + $0x14] sm:$0xf]
  %v394 = vld [vmem:[%s387 + $0x18] sm:$0xf]
  %v395 = vld [vmem:[%s387 + $0x1c] sm:$0xf]
  %v396 = vld [vmem:[%s387 + $0x20] sm:$0xf]
  %v397 = vld [vmem:[%s387 + $0x24] sm:$0xf]
  %v398 = vld [vmem:[%s387 + $0x28] sm:$0xf]
  %v399 = vld [vmem:[%s387 + $0x2c] sm:$0xf]
  %v400 = vld [vmem:[%s387 + $0x30] sm:$0xf]
  %v401 = vld [vmem:[%s387 + $0x34] sm:$0xf]
  %v402 = vld [vmem:[%s387 + $0x38] sm:$0xf]
  %v403 = vld [vmem:[%s387 + $0x3c] sm:$0xf]
  %v404 = vld [vmem:[%s387 + $0x40] sm:$0xf]
  %v405 = vld [vmem:[%s387 + $0x44] sm:$0xf]
  %v406 = vld [vmem:[%s387 + $0x48] sm:$0xf]
  %v407 = vld [vmem:[%s387 + $0x4c] sm:$0xf]
  %v408 = vld [vmem:[%s387 + $0x50] sm:$0xf]
  %v409 = vld [vmem:[%s387 + $0x54] sm:$0xf]
  %v410 = vld [vmem:[%s387 + $0x58] sm:$0xf]
  %v411 = vld [vmem:[%s387 + $0x5c] sm:$0xf]
  %v412 = vld [vmem:[%s387 + $0x60] sm:$0xf]
  %v413 = vld [vmem:[%s387 + $0x64] sm:$0xf]
  %v414 = vld [vmem:[%s387 + $0x68] sm:$0xf]
  %v415 = vld [vmem:[%s387 + $0x6c] sm:$0xf]
  %v416 = vld [vmem:[%s387 + $0x70] sm:$0xf]
  %v417 = vld [vmem:[%s387 + $0x74] sm:$0xf]
  %v418 = vld [vmem:[%s387 + $0x78] sm:$0xf]
  %v419 = vld [vmem:[%s387 + $0x7c] sm:$0xf]
  %v420 = vld [vmem:[%s387 + $0x80] sm:$0xf]
  %v421 = vld [vmem:[%s387 + $0x84] sm:$0xf]
  %v422 = vld [vmem:[%s387 + $0x88] sm:$0xf]
  %v423 = vld [vmem:[%s387 + $0x8c] sm:$0xf]
  %v424 = vld [vmem:[%s387 + $0x90] sm:$0xf]
  %v425 = vld [vmem:[%s387 + $0x94] sm:$0xf]
  %v426 = vld [vmem:[%s387 + $0x98] sm:$0xf]
  %v427 = vld [vmem:[%s387 + $0x9c] sm:$0xf]
  %v428 = vld [vmem:[%s387 + $0xa0] sm:$0xf]
  %v429 = vld [vmem:[%s387 + $0xa4] sm:$0xf]
  %v430 = vld [vmem:[%s387 + $0xa8] sm:$0xf]
  %v431 = vld [vmem:[%s387 + $0xac] sm:$0xf]
  %v432 = vld [vmem:[%s387 + $0xb0] sm:$0xf]
  %v433 = vld [vmem:[%s387 + $0xb4] sm:$0xf]
  %v434 = vld [vmem:[%s387 + $0xb8] sm:$0xf]
  %v435 = vld [vmem:[%s387 + $0xbc] sm:$0xf]
  %v436 = vperm.slane %v21, 1
  %v485 = vunpack.c.l.b16 %v388
  %v486 = vunpack.c.l.b16 %v389
  %v487 = vunpack.c.l.b16 %v390
  %v488 = vunpack.c.l.b16 %v391
  %v489 = vunpack.c.l.b16 %v392
  %v490 = vunpack.c.l.b16 %v393
  %v491 = vunpack.c.l.b16 %v394
  %v492 = vunpack.c.l.b16 %v395
  %v493 = vunpack.c.l.b16 %v396
  %v494 = vunpack.c.l.b16 %v397
  %v495 = vunpack.c.l.b16 %v398
  %v496 = vunpack.c.l.b16 %v399
  %v497 = vunpack.c.l.b16 %v400
  %v498 = vunpack.c.l.b16 %v401
  %v499 = vunpack.c.l.b16 %v402
  %v500 = vunpack.c.l.b16 %v403
  %v501 = vunpack.c.l.b16 %v404
  %v502 = vunpack.c.l.b16 %v405
  %v503 = vunpack.c.l.b16 %v406
  %v504 = vunpack.c.l.b16 %v407
  %v505 = vunpack.c.l.b16 %v408
  %v506 = vunpack.c.l.b16 %v409
  %v507 = vunpack.c.l.b16 %v410
  %v508 = vunpack.c.l.b16 %v411
  %v509 = vunpack.c.l.b16 %v412
  %v510 = vunpack.c.l.b16 %v413
  %v511 = vunpack.c.l.b16 %v414
  %v512 = vunpack.c.l.b16 %v415
  %v513 = vunpack.c.l.b16 %v416
  %v514 = vunpack.c.l.b16 %v417
  %v515 = vunpack.c.l.b16 %v418
  %v516 = vunpack.c.l.b16 %v419
  %v517 = vunpack.c.l.b16 %v420
  %v518 = vunpack.c.l.b16 %v421
  %v519 = vunpack.c.l.b16 %v422
  %v520 = vunpack.c.l.b16 %v423
  %v521 = vunpack.c.l.b16 %v424
  %v522 = vunpack.c.l.b16 %v425
  %v523 = vunpack.c.l.b16 %v426
  %v524 = vunpack.c.l.b16 %v427
  %v525 = vunpack.c.l.b16 %v428
  %v526 = vunpack.c.l.b16 %v429
  %v527 = vunpack.c.l.b16 %v430
  %v528 = vunpack.c.l.b16 %v431
  %v529 = vunpack.c.l.b16 %v432
  %v530 = vunpack.c.l.b16 %v433
  %v531 = vunpack.c.l.b16 %v434
  %v532 = vunpack.c.l.b16 %v435
  %v533 = vpack.c.b16 %v486, %v485
  %v534 = vpack.c.b16 %v488, %v487
  %v535 = vpack.c.b16 %v490, %v489
  %v536 = vpack.c.b16 %v492, %v491
  %v537 = vpack.c.b16 %v494, %v493
  %v538 = vpack.c.b16 %v496, %v495
  %v539 = vpack.c.b16 %v498, %v497
  %v540 = vpack.c.b16 %v500, %v499
  %v541 = vpack.c.b16 %v502, %v501
  %v542 = vpack.c.b16 %v504, %v503
  %v543 = vpack.c.b16 %v506, %v505
  %v544 = vpack.c.b16 %v508, %v507
  %v545 = vpack.c.b16 %v510, %v509
  %v546 = vpack.c.b16 %v512, %v511
  %v547 = vpack.c.b16 %v514, %v513
  %v548 = vpack.c.b16 %v516, %v515
  %v549 = vpack.c.b16 %v518, %v517
  %v550 = vpack.c.b16 %v520, %v519
  %v551 = vpack.c.b16 %v522, %v521
  %v552 = vpack.c.b16 %v524, %v523
  %v553 = vpack.c.b16 %v526, %v525
  %v554 = vpack.c.b16 %v528, %v527
  %v555 = vpack.c.b16 %v530, %v529
  %v556 = vpack.c.b16 %v532, %v531
  %581 = vmatpush.bf16.msra.mxu0 %v540
  %582 = vmatpush.bf16.msra.mxu0 %v539
  %583 = vmatpush.bf16.msra.mxu0 %v538
  %584 = vmatpush.bf16.msra.mxu0 %v537
  %585 = vmatpush.bf16.msra.mxu0 %v536
  %586 = vmatpush.bf16.msra.mxu0 %v535
  %587 = vmatpush.bf16.msra.mxu0 %v534
  %588 = vmatpush.bf16.msra.mxu0 %v533
  %589 = vmatmul.bf16.gmra.mxu0 %v381
  %v590 = vpop.f32.mrf.mxu0
  %v591 = vadd.f32 %v436, %v590
  %v592 = vpop.f32.mrf.mxu0
  %v593 = vadd.f32 %v436, %v592
  %594 = vmatmul.bf16.gmra.mxu0 %v384
  %v595 = vpop.f32.mrf.mxu0
  %v596 = vadd.f32 %v436, %v595
  %v597 = vpop.f32.mrf.mxu0
  %v598 = vadd.f32 %v436, %v597
  %599 = vdwg.mxu0
  %600 = vmatpush.bf16.msra.mxu0 %v548
  %601 = vmatpush.bf16.msra.mxu0 %v547
  %602 = vmatpush.bf16.msra.mxu0 %v546
  %603 = vmatpush.bf16.msra.mxu0 %v545
  %604 = vmatpush.bf16.msra.mxu0 %v544
  %605 = vmatpush.bf16.msra.mxu0 %v543
  %606 = vmatpush.bf16.msra.mxu0 %v542
  %607 = vmatpush.bf16.msra.mxu0 %v541
  %608 = vmatmul.bf16.gmra.mxu0 %v382
  %v609 = vpop.f32.mrf.mxu0
  %v610 = vadd.f32 %v591, %v609
  %v611 = vpop.f32.mrf.mxu0
  %v612 = vadd.f32 %v593, %v611
  %613 = vmatmul.bf16.gmra.mxu0 %v385
  %v614 = vpop.f32.mrf.mxu0
  %v615 = vadd.f32 %v596, %v614
  %v616 = vpop.f32.mrf.mxu0
  %v617 = vadd.f32 %v598, %v616
  %618 = vdwg.mxu0
  %619 = vmatpush.bf16.msra.mxu0 %v556
  %620 = vmatpush.bf16.msra.mxu0 %v555
  %621 = vmatpush.bf16.msra.mxu0 %v554
  %622 = vmatpush.bf16.msra.mxu0 %v553
  %623 = vmatpush.bf16.msra.mxu0 %v552
  %624 = vmatpush.bf16.msra.mxu0 %v551
  %625 = vmatpush.bf16.msra.mxu0 %v550
  %626 = vmatpush.bf16.msra.mxu0 %v549
  %627 = vmatmul.bf16.gmra.mxu0 %v383
  %v628 = vpop.f32.mrf.mxu0
  %v629 = vadd.f32 %v610, %v628
  %v630 = vpop.f32.mrf.mxu0
  %v631 = vadd.f32 %v612, %v630
  %632 = vmatmul.bf16.gmra.mxu0 %v386
  %v633 = vpop.f32.mrf.mxu0
  %v634 = vadd.f32 %v615, %v633
  %v635 = vpop.f32.mrf.mxu0
  %v636 = vadd.f32 %v617, %v635
  %637 = vdwg.mxu0
  %v638 = vadd.f32 %v629, %v17
  %v639 = vadd.f32 %v631, %v18
  %v640 = vadd.f32 %v634, %v19
  %v641 = vadd.f32 %v636, %v20
  %v642 = vmax.f32 %v638, 0.0
  %v643 = vmax.f32 %v639, 0.0
  %v644 = vmax.f32 %v640, 0.0
  %v645 = vmax.f32 %v641, 0.0
  %646 = vst [vmem:[#allocation2 + $0x8] sm:$0xff] %v642
  %647 = vst [vmem:[#allocation2 + $0x10] sm:$0xff] %v643
  %648 = vst [vmem:[#allocation2 + $0x18] sm:$0xff] %v644
  %649 = vst [vmem:[#allocation2 + $0x20] sm:$0xff] %v645
  %v650 = vld [vmem:[#allocation2 + $0x7] sm:$0xff]
  %v651 = vld [vmem:[#allocation2 + $0xf] sm:$0xff]
  %v652 = vld [vmem:[#allocation2 + $0x17] sm:$0xff]
  %v653 = vld [vmem:[#allocation2 + $0x1f] sm:$0xff]
  %v654 = vsel %vm51, %v650, 0.0
  %v655 = vsel %vm52, %v651, 0.0
  %v656 = vsel %vm53, %v652, 0.0
  %v657 = vsel %vm54, %v653, 0.0
  %v658 = vld [vmem:[#allocation2 + $0x9] sm:$0xff]
  %v659 = vld [vmem:[#allocation2 + $0x11] sm:$0xff]
  %v660 = vld [vmem:[#allocation2 + $0x19] sm:$0xff]
  %v661 = vld [vmem:[#allocation2 + $0x21] sm:$0xff]
  %v662 = vsel %vm71, %v658, 0.0
  %v663 = vsel %vm72, %v659, 0.0
  %v664 = vsel %vm73, %v660, 0.0
  %v665 = vsel %vm74, %v661, 0.0
  %v666 = vpack.c.bf16 %v655, %v654
  %v667 = vpack.c.bf16 %v643, %v642
  %v668 = vpack.c.bf16 %v663, %v662
  %v669 = vpack.c.bf16 %v657, %v656
  %v670 = vpack.c.bf16 %v645, %v644
  %v671 = vpack.c.bf16 %v665, %v664
  %s672 = scalar_lea.vmem %s1, 384
  %v673 = vld [vmem:[%s672] sm:$0xf]
  %v674 = vld [vmem:[%s672 + $0x4] sm:$0xf]
  %v675 = vld [vmem:[%s672 + $0x8] sm:$0xf]
  %v676 = vld [vmem:[%s672 + $0xc] sm:$0xf]
  %v677 = vld [vmem:[%s672 + $0x10] sm:$0xf]
  %v678 = vld [vmem:[%s672 + $0x14] sm:$0xf]
  %v679 = vld [vmem:[%s672 + $0x18] sm:$0xf]
  %v680 = vld [vmem:[%s672 + $0x1c] sm:$0xf]
  %v681 = vld [vmem:[%s672 + $0x20] sm:$0xf]
  %v682 = vld [vmem:[%s672 + $0x24] sm:$0xf]
  %v683 = vld [vmem:[%s672 + $0x28] sm:$0xf]
  %v684 = vld [vmem:[%s672 + $0x2c] sm:$0xf]
  %v685 = vld [vmem:[%s672 + $0x30] sm:$0xf]
  %v686 = vld [vmem:[%s672 + $0x34] sm:$0xf]
  %v687 = vld [vmem:[%s672 + $0x38] sm:$0xf]
  %v688 = vld [vmem:[%s672 + $0x3c] sm:$0xf]
  %v689 = vld [vmem:[%s672 + $0x40] sm:$0xf]
  %v690 = vld [vmem:[%s672 + $0x44] sm:$0xf]
  %v691 = vld [vmem:[%s672 + $0x48] sm:$0xf]
  %v692 = vld [vmem:[%s672 + $0x4c] sm:$0xf]
  %v693 = vld [vmem:[%s672 + $0x50] sm:$0xf]
  %v694 = vld [vmem:[%s672 + $0x54] sm:$0xf]
  %v695 = vld [vmem:[%s672 + $0x58] sm:$0xf]
  %v696 = vld [vmem:[%s672 + $0x5c] sm:$0xf]
  %v697 = vld [vmem:[%s672 + $0x60] sm:$0xf]
  %v698 = vld [vmem:[%s672 + $0x64] sm:$0xf]
  %v699 = vld [vmem:[%s672 + $0x68] sm:$0xf]
  %v700 = vld [vmem:[%s672 + $0x6c] sm:$0xf]
  %v701 = vld [vmem:[%s672 + $0x70] sm:$0xf]
  %v702 = vld [vmem:[%s672 + $0x74] sm:$0xf]
  %v703 = vld [vmem:[%s672 + $0x78] sm:$0xf]
  %v704 = vld [vmem:[%s672 + $0x7c] sm:$0xf]
  %v705 = vld [vmem:[%s672 + $0x80] sm:$0xf]
  %v706 = vld [vmem:[%s672 + $0x84] sm:$0xf]
  %v707 = vld [vmem:[%s672 + $0x88] sm:$0xf]
  %v708 = vld [vmem:[%s672 + $0x8c] sm:$0xf]
  %v709 = vld [vmem:[%s672 + $0x90] sm:$0xf]
  %v710 = vld [vmem:[%s672 + $0x94] sm:$0xf]
  %v711 = vld [vmem:[%s672 + $0x98] sm:$0xf]
  %v712 = vld [vmem:[%s672 + $0x9c] sm:$0xf]
  %v713 = vld [vmem:[%s672 + $0xa0] sm:$0xf]
  %v714 = vld [vmem:[%s672 + $0xa4] sm:$0xf]
  %v715 = vld [vmem:[%s672 + $0xa8] sm:$0xf]
  %v716 = vld [vmem:[%s672 + $0xac] sm:$0xf]
  %v717 = vld [vmem:[%s672 + $0xb0] sm:$0xf]
  %v718 = vld [vmem:[%s672 + $0xb4] sm:$0xf]
  %v719 = vld [vmem:[%s672 + $0xb8] sm:$0xf]
  %v720 = vld [vmem:[%s672 + $0xbc] sm:$0xf]
  %v721 = vperm.slane %v21, 2
  %v770 = vunpack.c.l.b16 %v673
  %v771 = vunpack.c.l.b16 %v674
  %v772 = vunpack.c.l.b16 %v675
  %v773 = vunpack.c.l.b16 %v676
  %v774 = vunpack.c.l.b16 %v677
  %v775 = vunpack.c.l.b16 %v678
  %v776 = vunpack.c.l.b16 %v679
  %v777 = vunpack.c.l.b16 %v680
  %v778 = vunpack.c.l.b16 %v681
  %v779 = vunpack.c.l.b16 %v682
  %v780 = vunpack.c.l.b16 %v683
  %v781 = vunpack.c.l.b16 %v684
  %v782 = vunpack.c.l.b16 %v685
  %v783 = vunpack.c.l.b16 %v686
  %v784 = vunpack.c.l.b16 %v687
  %v785 = vunpack.c.l.b16 %v688
  %v786 = vunpack.c.l.b16 %v689
  %v787 = vunpack.c.l.b16 %v690
  %v788 = vunpack.c.l.b16 %v691
  %v789 = vunpack.c.l.b16 %v692
  %v790 = vunpack.c.l.b16 %v693
  %v791 = vunpack.c.l.b16 %v694
  %v792 = vunpack.c.l.b16 %v695
  %v793 = vunpack.c.l.b16 %v696
  %v794 = vunpack.c.l.b16 %v697
  %v795 = vunpack.c.l.b16 %v698
  %v796 = vunpack.c.l.b16 %v699
  %v797 = vunpack.c.l.b16 %v700
  %v798 = vunpack.c.l.b16 %v701
  %v799 = vunpack.c.l.b16 %v702
  %v800 = vunpack.c.l.b16 %v703
  %v801 = vunpack.c.l.b16 %v704
  %v802 = vunpack.c.l.b16 %v705
  %v803 = vunpack.c.l.b16 %v706
  %v804 = vunpack.c.l.b16 %v707
  %v805 = vunpack.c.l.b16 %v708
  %v806 = vunpack.c.l.b16 %v709
  %v807 = vunpack.c.l.b16 %v710
  %v808 = vunpack.c.l.b16 %v711
  %v809 = vunpack.c.l.b16 %v712
  %v810 = vunpack.c.l.b16 %v713
  %v811 = vunpack.c.l.b16 %v714
  %v812 = vunpack.c.l.b16 %v715
  %v813 = vunpack.c.l.b16 %v716
  %v814 = vunpack.c.l.b16 %v717
  %v815 = vunpack.c.l.b16 %v718
  %v816 = vunpack.c.l.b16 %v719
  %v817 = vunpack.c.l.b16 %v720
  %v818 = vpack.c.b16 %v771, %v770
  %v819 = vpack.c.b16 %v773, %v772
  %v820 = vpack.c.b16 %v775, %v774
  %v821 = vpack.c.b16 %v777, %v776
  %v822 = vpack.c.b16 %v779, %v778
  %v823 = vpack.c.b16 %v781, %v780
  %v824 = vpack.c.b16 %v783, %v782
  %v825 = vpack.c.b16 %v785, %v784
  %v826 = vpack.c.b16 %v787, %v786
  %v827 = vpack.c.b16 %v789, %v788
  %v828 = vpack.c.b16 %v791, %v790
  %v829 = vpack.c.b16 %v793, %v792
  %v830 = vpack.c.b16 %v795, %v794
  %v831 = vpack.c.b16 %v797, %v796
  %v832 = vpack.c.b16 %v799, %v798
  %v833 = vpack.c.b16 %v801, %v800
  %v834 = vpack.c.b16 %v803, %v802
  %v835 = vpack.c.b16 %v805, %v804
  %v836 = vpack.c.b16 %v807, %v806
  %v837 = vpack.c.b16 %v809, %v808
  %v838 = vpack.c.b16 %v811, %v810
  %v839 = vpack.c.b16 %v813, %v812
  %v840 = vpack.c.b16 %v815, %v814
  %v841 = vpack.c.b16 %v817, %v816
  %866 = vmatpush.bf16.msra.mxu0 %v825
  %867 = vmatpush.bf16.msra.mxu0 %v824
  %868 = vmatpush.bf16.msra.mxu0 %v823
  %869 = vmatpush.bf16.msra.mxu0 %v822
  %870 = vmatpush.bf16.msra.mxu0 %v821
  %871 = vmatpush.bf16.msra.mxu0 %v820
  %872 = vmatpush.bf16.msra.mxu0 %v819
  %873 = vmatpush.bf16.msra.mxu0 %v818
  %874 = vmatmul.bf16.gmra.mxu0 %v666
  %v875 = vpop.f32.mrf.mxu0
  %v876 = vadd.f32 %v721, %v875
  %v877 = vpop.f32.mrf.mxu0
  %v878 = vadd.f32 %v721, %v877
  %879 = vmatmul.bf16.gmra.mxu0 %v669
  %v880 = vpop.f32.mrf.mxu0
  %v881 = vadd.f32 %v721, %v880
  %v882 = vpop.f32.mrf.mxu0
  %v883 = vadd.f32 %v721, %v882
  %884 = vdwg.mxu0
  %885 = vmatpush.bf16.msra.mxu0 %v833
  %886 = vmatpush.bf16.msra.mxu0 %v832
  %887 = vmatpush.bf16.msra.mxu0 %v831
  %888 = vmatpush.bf16.msra.mxu0 %v830
  %889 = vmatpush.bf16.msra.mxu0 %v829
  %890 = vmatpush.bf16.msra.mxu0 %v828
  %891 = vmatpush.bf16.msra.mxu0 %v827
  %892 = vmatpush.bf16.msra.mxu0 %v826
  %893 = vmatmul.bf16.gmra.mxu0 %v667
  %v894 = vpop.f32.mrf.mxu0
  %v895 = vadd.f32 %v876, %v894
  %v896 = vpop.f32.mrf.mxu0
  %v897 = vadd.f32 %v878, %v896
  %898 = vmatmul.bf16.gmra.mxu0 %v670
  %v899 = vpop.f32.mrf.mxu0
  %v900 = vadd.f32 %v881, %v899
  %v901 = vpop.f32.mrf.mxu0
  %v902 = vadd.f32 %v883, %v901
  %903 = vdwg.mxu0
  %904 = vmatpush.bf16.msra.mxu0 %v841
  %905 = vmatpush.bf16.msra.mxu0 %v840
  %906 = vmatpush.bf16.msra.mxu0 %v839
  %907 = vmatpush.bf16.msra.mxu0 %v838
  %908 = vmatpush.bf16.msra.mxu0 %v837
  %909 = vmatpush.bf16.msra.mxu0 %v836
  %910 = vmatpush.bf16.msra.mxu0 %v835
  %911 = vmatpush.bf16.msra.mxu0 %v834
  %912 = vmatmul.bf16.gmra.mxu0 %v668
  %v913 = vpop.f32.mrf.mxu0
  %v914 = vadd.f32 %v895, %v913
  %v915 = vpop.f32.mrf.mxu0
  %v916 = vadd.f32 %v897, %v915
  %917 = vmatmul.bf16.gmra.mxu0 %v671
  %v918 = vpop.f32.mrf.mxu0
  %v919 = vadd.f32 %v900, %v918
  %v920 = vpop.f32.mrf.mxu0
  %v921 = vadd.f32 %v902, %v920
  %922 = vdwg.mxu0
  %v923 = vmax.f32 %v914, 0.0
  %v924 = vmax.f32 %v916, 0.0
  %v925 = vmax.f32 %v919, 0.0
  %v926 = vmax.f32 %v921, 0.0
  %927 = vst [vmem:[#allocation2 + $0x8] sm:$0xff] %v923
  %928 = vst [vmem:[#allocation2 + $0x10] sm:$0xff] %v924
  %929 = vst [vmem:[#allocation2 + $0x18] sm:$0xff] %v925
  %930 = vst [vmem:[#allocation2 + $0x20] sm:$0xff] %v926
  %v931 = vld [vmem:[#allocation2 + $0x7] sm:$0xff]
  %v932 = vld [vmem:[#allocation2 + $0xf] sm:$0xff]
  %v933 = vld [vmem:[#allocation2 + $0x17] sm:$0xff]
  %v934 = vld [vmem:[#allocation2 + $0x1f] sm:$0xff]
  %v935 = vsel %vm51, %v931, 0.0
  %v936 = vsel %vm52, %v932, 0.0
  %v937 = vsel %vm53, %v933, 0.0
  %v938 = vsel %vm54, %v934, 0.0
  %v939 = vld [vmem:[#allocation2 + $0x9] sm:$0xff]
  %v940 = vld [vmem:[#allocation2 + $0x11] sm:$0xff]
  %v941 = vld [vmem:[#allocation2 + $0x19] sm:$0xff]
  %v942 = vld [vmem:[#allocation2 + $0x21] sm:$0xff]
  %v943 = vsel %vm71, %v939, 0.0
  %v944 = vsel %vm72, %v940, 0.0
  %v945 = vsel %vm73, %v941, 0.0
  %v946 = vsel %vm74, %v942, 0.0
  %v947 = vpack.c.bf16 %v936, %v935
  %v948 = vpack.c.bf16 %v924, %v923
  %v949 = vpack.c.bf16 %v944, %v943
  %v950 = vpack.c.bf16 %v938, %v937
  %v951 = vpack.c.bf16 %v926, %v925
  %v952 = vpack.c.bf16 %v946, %v945
  %s953 = scalar_lea.vmem %s1, 576
  %v954 = vld [vmem:[%s953] sm:$0xf]
  %v955 = vld [vmem:[%s953 + $0x4] sm:$0xf]
  %v956 = vld [vmem:[%s953 + $0x8] sm:$0xf]
  %v957 = vld [vmem:[%s953 + $0xc] sm:$0xf]
  %v958 = vld [vmem:[%s953 + $0x10] sm:$0xf]
  %v959 = vld [vmem:[%s953 + $0x14] sm:$0xf]
  %v960 = vld [vmem:[%s953 + $0x18] sm:$0xf]
  %v961 = vld [vmem:[%s953 + $0x1c] sm:$0xf]
  %v962 = vld [vmem:[%s953 + $0x20] sm:$0xf]
  %v963 = vld [vmem:[%s953 + $0x24] sm:$0xf]
  %v964 = vld [vmem:[%s953 + $0x28] sm:$0xf]
  %v965 = vld [vmem:[%s953 + $0x2c] sm:$0xf]
  %v966 = vld [vmem:[%s953 + $0x30] sm:$0xf]
  %v967 = vld [vmem:[%s953 + $0x34] sm:$0xf]
  %v968 = vld [vmem:[%s953 + $0x38] sm:$0xf]
  %v969 = vld [vmem:[%s953 + $0x3c] sm:$0xf]
  %v970 = vld [vmem:[%s953 + $0x40] sm:$0xf]
  %v971 = vld [vmem:[%s953 + $0x44] sm:$0xf]
  %v972 = vld [vmem:[%s953 + $0x48] sm:$0xf]
  %v973 = vld [vmem:[%s953 + $0x4c] sm:$0xf]
  %v974 = vld [vmem:[%s953 + $0x50] sm:$0xf]
  %v975 = vld [vmem:[%s953 + $0x54] sm:$0xf]
  %v976 = vld [vmem:[%s953 + $0x58] sm:$0xf]
  %v977 = vld [vmem:[%s953 + $0x5c] sm:$0xf]
  %v978 = vld [vmem:[%s953 + $0x60] sm:$0xf]
  %v979 = vld [vmem:[%s953 + $0x64] sm:$0xf]
  %v980 = vld [vmem:[%s953 + $0x68] sm:$0xf]
  %v981 = vld [vmem:[%s953 + $0x6c] sm:$0xf]
  %v982 = vld [vmem:[%s953 + $0x70] sm:$0xf]
  %v983 = vld [vmem:[%s953 + $0x74] sm:$0xf]
  %v984 = vld [vmem:[%s953 + $0x78] sm:$0xf]
  %v985 = vld [vmem:[%s953 + $0x7c] sm:$0xf]
  %v986 = vld [vmem:[%s953 + $0x80] sm:$0xf]
  %v987 = vld [vmem:[%s953 + $0x84] sm:$0xf]
  %v988 = vld [vmem:[%s953 + $0x88] sm:$0xf]
  %v989 = vld [vmem:[%s953 + $0x8c] sm:$0xf]
  %v990 = vld [vmem:[%s953 + $0x90] sm:$0xf]
  %v991 = vld [vmem:[%s953 + $0x94] sm:$0xf]
  %v992 = vld [vmem:[%s953 + $0x98] sm:$0xf]
  %v993 = vld [vmem:[%s953 + $0x9c] sm:$0xf]
  %v994 = vld [vmem:[%s953 + $0xa0] sm:$0xf]
  %v995 = vld [vmem:[%s953 + $0xa4] sm:$0xf]
  %v996 = vld [vmem:[%s953 + $0xa8] sm:$0xf]
  %v997 = vld [vmem:[%s953 + $0xac] sm:$0xf]
  %v998 = vld [vmem:[%s953 + $0xb0] sm:$0xf]
  %v999 = vld [vmem:[%s953 + $0xb4] sm:$0xf]
  %v1000 = vld [vmem:[%s953 + $0xb8] sm:$0xf]
  %v1001 = vld [vmem:[%s953 + $0xbc] sm:$0xf]
  %v1002 = vperm.slane %v21, 3
  %v1051 = vunpack.c.l.b16 %v954
  %v1052 = vunpack.c.l.b16 %v955
  %v1053 = vunpack.c.l.b16 %v956
  %v1054 = vunpack.c.l.b16 %v957
  %v1055 = vunpack.c.l.b16 %v958
  %v1056 = vunpack.c.l.b16 %v959
  %v1057 = vunpack.c.l.b16 %v960
  %v1058 = vunpack.c.l.b16 %v961
  %v1059 = vunpack.c.l.b16 %v962
  %v1060 = vunpack.c.l.b16 %v963
  %v1061 = vunpack.c.l.b16 %v964
  %v1062 = vunpack.c.l.b16 %v965
  %v1063 = vunpack.c.l.b16 %v966
  %v1064 = vunpack.c.l.b16 %v967
  %v1065 = vunpack.c.l.b16 %v968
  %v1066 = vunpack.c.l.b16 %v969
  %v1067 = vunpack.c.l.b16 %v970
  %v1068 = vunpack.c.l.b16 %v971
  %v1069 = vunpack.c.l.b16 %v972
  %v1070 = vunpack.c.l.b16 %v973
  %v1071 = vunpack.c.l.b16 %v974
  %v1072 = vunpack.c.l.b16 %v975
  %v1073 = vunpack.c.l.b16 %v976
  %v1074 = vunpack.c.l.b16 %v977
  %v1075 = vunpack.c.l.b16 %v978
  %v1076 = vunpack.c.l.b16 %v979
  %v1077 = vunpack.c.l.b16 %v980
  %v1078 = vunpack.c.l.b16 %v981
  %v1079 = vunpack.c.l.b16 %v982
  %v1080 = vunpack.c.l.b16 %v983
  %v1081 = vunpack.c.l.b16 %v984
  %v1082 = vunpack.c.l.b16 %v985
  %v1083 = vunpack.c.l.b16 %v986
  %v1084 = vunpack.c.l.b16 %v987
  %v1085 = vunpack.c.l.b16 %v988
  %v1086 = vunpack.c.l.b16 %v989
  %v1087 = vunpack.c.l.b16 %v990
  %v1088 = vunpack.c.l.b16 %v991
  %v1089 = vunpack.c.l.b16 %v992
  %v1090 = vunpack.c.l.b16 %v993
  %v1091 = vunpack.c.l.b16 %v994
  %v1092 = vunpack.c.l.b16 %v995
  %v1093 = vunpack.c.l.b16 %v996
  %v1094 = vunpack.c.l.b16 %v997
  %v1095 = vunpack.c.l.b16 %v998
  %v1096 = vunpack.c.l.b16 %v999
  %v1097 = vunpack.c.l.b16 %v1000
  %v1098 = vunpack.c.l.b16 %v1001
  %v1099 = vpack.c.b16 %v1052, %v1051
  %v1100 = vpack.c.b16 %v1054, %v1053
  %v1101 = vpack.c.b16 %v1056, %v1055
  %v1102 = vpack.c.b16 %v1058, %v1057
  %v1103 = vpack.c.b16 %v1060, %v1059
  %v1104 = vpack.c.b16 %v1062, %v1061
  %v1105 = vpack.c.b16 %v1064, %v1063
  %v1106 = vpack.c.b16 %v1066, %v1065
  %v1107 = vpack.c.b16 %v1068, %v1067
  %v1108 = vpack.c.b16 %v1070, %v1069
  %v1109 = vpack.c.b16 %v1072, %v1071
  %v1110 = vpack.c.b16 %v1074, %v1073
  %v1111 = vpack.c.b16 %v1076, %v1075
  %v1112 = vpack.c.b16 %v1078, %v1077
  %v1113 = vpack.c.b16 %v1080, %v1079
  %v1114 = vpack.c.b16 %v1082, %v1081
  %v1115 = vpack.c.b16 %v1084, %v1083
  %v1116 = vpack.c.b16 %v1086, %v1085
  %v1117 = vpack.c.b16 %v1088, %v1087
  %v1118 = vpack.c.b16 %v1090, %v1089
  %v1119 = vpack.c.b16 %v1092, %v1091
  %v1120 = vpack.c.b16 %v1094, %v1093
  %v1121 = vpack.c.b16 %v1096, %v1095
  %v1122 = vpack.c.b16 %v1098, %v1097
  %1147 = vmatpush.bf16.msra.mxu0 %v1106
  %1148 = vmatpush.bf16.msra.mxu0 %v1105
  %1149 = vmatpush.bf16.msra.mxu0 %v1104
  %1150 = vmatpush.bf16.msra.mxu0 %v1103
  %1151 = vmatpush.bf16.msra.mxu0 %v1102
  %1152 = vmatpush.bf16.msra.mxu0 %v1101
  %1153 = vmatpush.bf16.msra.mxu0 %v1100
  %1154 = vmatpush.bf16.msra.mxu0 %v1099
  %1155 = vmatmul.bf16.gmra.mxu0 %v947
  %v1156 = vpop.f32.mrf.mxu0
  %v1157 = vadd.f32 %v1002, %v1156
  %v1158 = vpop.f32.mrf.mxu0
  %v1159 = vadd.f32 %v1002, %v1158
  %1160 = vmatmul.bf16.gmra.mxu0 %v950
  %v1161 = vpop.f32.mrf.mxu0
  %v1162 = vadd.f32 %v1002, %v1161
  %v1163 = vpop.f32.mrf.mxu0
  %v1164 = vadd.f32 %v1002, %v1163
  %1165 = vdwg.mxu0
  %1166 = vmatpush.bf16.msra.mxu0 %v1114
  %1167 = vmatpush.bf16.msra.mxu0 %v1113
  %1168 = vmatpush.bf16.msra.mxu0 %v1112
  %1169 = vmatpush.bf16.msra.mxu0 %v1111
  %1170 = vmatpush.bf16.msra.mxu0 %v1110
  %1171 = vmatpush.bf16.msra.mxu0 %v1109
  %1172 = vmatpush.bf16.msra.mxu0 %v1108
  %1173 = vmatpush.bf16.msra.mxu0 %v1107
  %1174 = vmatmul.bf16.gmra.mxu0 %v948
  %v1175 = vpop.f32.mrf.mxu0
  %v1176 = vadd.f32 %v1157, %v1175
  %v1177 = vpop.f32.mrf.mxu0
  %v1178 = vadd.f32 %v1159, %v1177
  %1179 = vmatmul.bf16.gmra.mxu0 %v951
  %v1180 = vpop.f32.mrf.mxu0
  %v1181 = vadd.f32 %v1162, %v1180
  %v1182 = vpop.f32.mrf.mxu0
  %v1183 = vadd.f32 %v1164, %v1182
  %1184 = vdwg.mxu0
  %1185 = vmatpush.bf16.msra.mxu0 %v1122
  %1186 = vmatpush.bf16.msra.mxu0 %v1121
  %1187 = vmatpush.bf16.msra.mxu0 %v1120
  %1188 = vmatpush.bf16.msra.mxu0 %v1119
  %1189 = vmatpush.bf16.msra.mxu0 %v1118
  %1190 = vmatpush.bf16.msra.mxu0 %v1117
  %1191 = vmatpush.bf16.msra.mxu0 %v1116
  %1192 = vmatpush.bf16.msra.mxu0 %v1115
  %1193 = vmatmul.bf16.gmra.mxu0 %v949
  %v1194 = vpop.f32.mrf.mxu0
  %v1195 = vadd.f32 %v1176, %v1194
  %v1196 = vpop.f32.mrf.mxu0
  %v1197 = vadd.f32 %v1178, %v1196
  %1198 = vmatmul.bf16.gmra.mxu0 %v952
  %v1199 = vpop.f32.mrf.mxu0
  %v1200 = vadd.f32 %v1181, %v1199
  %v1201 = vpop.f32.mrf.mxu0
  %v1202 = vadd.f32 %v1183, %v1201
  %1203 = vdwg.mxu0
  %v1204 = vadd.f32 %v1195, %v642
  %v1205 = vadd.f32 %v1197, %v643
  %v1206 = vadd.f32 %v1200, %v644
  %v1207 = vadd.f32 %v1202, %v645
  %v1208 = vmax.f32 %v1204, 0.0
  %v1209 = vmax.f32 %v1205, 0.0
  %v1210 = vmax.f32 %v1206, 0.0
  %v1211 = vmax.f32 %v1207, 0.0
  %v1212 = vpack.c.bf16 %v1209, %v1208
  %v1213 = vpack.c.bf16 %v1211, %v1210
  %v1214 = vld [vmem:[%s2] sm:$0xf]
  %v1215 = vld [vmem:[%s2 + $0x4] sm:$0xf]
  %v1216 = vld [vmem:[%s2 + $0x8] sm:$0xf]
  %v1217 = vld [vmem:[%s2 + $0xc] sm:$0xf]
  %v1218 = vld [vmem:[%s2 + $0x10] sm:$0xf]
  %v1219 = vld [vmem:[%s2 + $0x14] sm:$0xf]
  %v1220 = vld [vmem:[%s2 + $0x18] sm:$0xf]
  %v1221 = vld [vmem:[%s2 + $0x1c] sm:$0xf]
  %v1222 = vld [vmem:[%s2 + $0x20] sm:$0xf]
  %v1223 = vld [vmem:[%s2 + $0x24] sm:$0xf]
  %v1224 = vld [vmem:[%s2 + $0x28] sm:$0xf]
  %v1225 = vld [vmem:[%s2 + $0x2c] sm:$0xf]
  %v1226 = vld [vmem:[%s2 + $0x30] sm:$0xf]
  %v1227 = vld [vmem:[%s2 + $0x34] sm:$0xf]
  %v1228 = vld [vmem:[%s2 + $0x38] sm:$0xf]
  %v1229 = vld [vmem:[%s2 + $0x3c] sm:$0xf]
  %v1230 = vld [vmem:[%s2 + $0x40] sm:$0xf]
  %v1231 = vld [vmem:[%s2 + $0x44] sm:$0xf]
  %v1232 = vld [vmem:[%s2 + $0x48] sm:$0xf]
  %v1233 = vld [vmem:[%s2 + $0x4c] sm:$0xf]
  %v1234 = vld [vmem:[%s2 + $0x50] sm:$0xf]
  %v1235 = vld [vmem:[%s2 + $0x54] sm:$0xf]
  %v1236 = vld [vmem:[%s2 + $0x58] sm:$0xf]
  %v1237 = vld [vmem:[%s2 + $0x5c] sm:$0xf]
  %v1238 = vld [vmem:[%s2 + $0x60] sm:$0xf]
  %v1239 = vld [vmem:[%s2 + $0x64] sm:$0xf]
  %v1240 = vld [vmem:[%s2 + $0x68] sm:$0xf]
  %v1241 = vld [vmem:[%s2 + $0x6c] sm:$0xf]
  %v1242 = vld [vmem:[%s2 + $0x70] sm:$0xf]
  %v1243 = vld [vmem:[%s2 + $0x74] sm:$0xf]
  %v1244 = vld [vmem:[%s2 + $0x78] sm:$0xf]
  %v1245 = vld [vmem:[%s2 + $0x7c] sm:$0xf]
  %v1246 = vperm.slane %v21, 4
  %v1279 = vunpack.c.l.b16 %v1214
  %v1280 = vunpack.c.l.b16 %v1215
  %v1281 = vunpack.c.l.b16 %v1216
  %v1282 = vunpack.c.l.b16 %v1217
  %v1283 = vunpack.c.l.b16 %v1218
  %v1284 = vunpack.c.l.b16 %v1219
  %v1285 = vunpack.c.l.b16 %v1220
  %v1286 = vunpack.c.l.b16 %v1221
  %v1287 = vunpack.c.l.b16 %v1222
  %v1288 = vunpack.c.l.b16 %v1223
  %v1289 = vunpack.c.l.b16 %v1224
  %v1290 = vunpack.c.l.b16 %v1225
  %v1291 = vunpack.c.l.b16 %v1226
  %v1292 = vunpack.c.l.b16 %v1227
  %v1293 = vunpack.c.l.b16 %v1228
  %v1294 = vunpack.c.l.b16 %v1229
  %v1295 = vunpack.c.l.b16 %v1230
  %v1296 = vunpack.c.l.b16 %v1231
  %v1297 = vunpack.c.l.b16 %v1232
  %v1298 = vunpack.c.l.b16 %v1233
  %v1299 = vunpack.c.l.b16 %v1234
  %v1300 = vunpack.c.l.b16 %v1235
  %v1301 = vunpack.c.l.b16 %v1236
  %v1302 = vunpack.c.l.b16 %v1237
  %v1303 = vunpack.c.l.b16 %v1238
  %v1304 = vunpack.c.l.b16 %v1239
  %v1305 = vunpack.c.l.b16 %v1240
  %v1306 = vunpack.c.l.b16 %v1241
  %v1307 = vunpack.c.l.b16 %v1242
  %v1308 = vunpack.c.l.b16 %v1243
  %v1309 = vunpack.c.l.b16 %v1244
  %v1310 = vunpack.c.l.b16 %v1245
  %v1311 = vpack.c.b16 %v1280, %v1279
  %v1312 = vpack.c.b16 %v1282, %v1281
  %v1313 = vpack.c.b16 %v1284, %v1283
  %v1314 = vpack.c.b16 %v1286, %v1285
  %v1315 = vpack.c.b16 %v1288, %v1287
  %v1316 = vpack.c.b16 %v1290, %v1289
  %v1317 = vpack.c.b16 %v1292, %v1291
  %v1318 = vpack.c.b16 %v1294, %v1293
  %v1319 = vpack.c.b16 %v1296, %v1295
  %v1320 = vpack.c.b16 %v1298, %v1297
  %v1321 = vpack.c.b16 %v1300, %v1299
  %v1322 = vpack.c.b16 %v1302, %v1301
  %v1323 = vpack.c.b16 %v1304, %v1303
  %v1324 = vpack.c.b16 %v1306, %v1305
  %v1325 = vpack.c.b16 %v1308, %v1307
  %v1326 = vpack.c.b16 %v1310, %v1309
  %1343 = vmatpush.bf16.msra.mxu0 %v1318
  %1344 = vmatpush.bf16.msra.mxu0 %v1317
  %1345 = vmatpush.bf16.msra.mxu0 %v1316
  %1346 = vmatpush.bf16.msra.mxu0 %v1315
  %1347 = vmatpush.bf16.msra.mxu0 %v1314
  %1348 = vmatpush.bf16.msra.mxu0 %v1313
  %1349 = vmatpush.bf16.msra.mxu0 %v1312
  %1350 = vmatpush.bf16.msra.mxu0 %v1311
  %1351 = vmatmul.bf16.gmra.mxu0 %v1212
  %v1352 = vpop.f32.mrf.mxu0
  %v1353 = vadd.f32 %v1246, %v1352
  %v1354 = vpop.f32.mrf.mxu0
  %v1355 = vadd.f32 %v1246, %v1354
  %1356 = vmatmul.bf16.gmra.mxu0 %v1213
  %v1357 = vpop.f32.mrf.mxu0
  %v1358 = vadd.f32 %v1246, %v1357
  %v1359 = vpop.f32.mrf.mxu0
  %v1360 = vadd.f32 %v1246, %v1359
  %1361 = vdwg.mxu0
  %1362 = vmatpush.bf16.msra.mxu0 %v1326
  %1363 = vmatpush.bf16.msra.mxu0 %v1325
  %1364 = vmatpush.bf16.msra.mxu0 %v1324
  %1365 = vmatpush.bf16.msra.mxu0 %v1323
  %1366 = vmatpush.bf16.msra.mxu0 %v1322
  %1367 = vmatpush.bf16.msra.mxu0 %v1321
  %1368 = vmatpush.bf16.msra.mxu0 %v1320
  %1369 = vmatpush.bf16.msra.mxu0 %v1319
  %1370 = vmatmul.bf16.gmra.mxu0 %v667
  %v1371 = vpop.f32.mrf.mxu0
  %v1372 = vadd.f32 %v1353, %v1371
  %v1373 = vpop.f32.mrf.mxu0
  %v1374 = vadd.f32 %v1355, %v1373
  %1375 = vmatmul.bf16.gmra.mxu0 %v670
  %v1376 = vpop.f32.mrf.mxu0
  %v1377 = vadd.f32 %v1358, %v1376
  %v1378 = vpop.f32.mrf.mxu0
  %v1379 = vadd.f32 %v1360, %v1378
  %1380 = vdwg.mxu0
  %v1381 = vmax.f32 %v1372, 0.0
  %v1382 = vmax.f32 %v1374, 0.0
  %v1383 = vmax.f32 %v1377, 0.0
  %v1384 = vmax.f32 %v1379, 0.0
  %1385 = vst [vmem:[%s4] sm:$0xff] %v1381
  %1386 = vst [vmem:[%s4 + $0x8] sm:$0xff] %v1382
  %1387 = vst [vmem:[%s4 + $0x10] sm:$0xff] %v1383
  %1388 = vst [vmem:[%s4 + $0x18] sm:$0xff] %v1384
  // Predicated region
  $region18: #{tree_forward.1} parent=0 // pred_check
    _
  $region19: #{tree_forward.1} parent=0 // pred_check_branch
    %1390 = sbr.rel (0) target = $region21
  $region20: #{tree_forward.1} parent=0 // pred_region
    _
  $region21: #{tree_forward.1} parent=0 // pred_fallthru
    _
  // Predicated region
  $region22: #{tree_forward.1} parent=0 // pred_check
    _
  $region23: #{tree_forward.1} parent=0 // pred_check_branch
    %1392 = sbr.rel (0) target = $region25
  $region24: #{tree_forward.1} parent=0 // pred_region
    _
  $region25: #{tree_forward.1} parent=0 // pred_fallthru
    _

</llo_original>
